<compile_context>
chip_gen: v6e
topology: v6e:2x2x1
jax: 0.10.0
libtpu: 0.0.40
codegen_flags: <defaults>
</compile_context>

<pallas_src>
import jax
import jax.numpy as jnp
from jax.experimental import pallas as pl
from jax.experimental.pallas import tpu as pltpu


_VMEM_LIMIT = 32 * 1024 * 1024  # safe on v5e / v6e / v7x


# ----------------------------------------------------------------------------
# helpers
# ----------------------------------------------------------------------------
def _round_up(x, m):
    return ((x + m - 1) // m) * m


def _pad2d(x, rows, cols):
    r, c = x.shape
    if r == rows and c == cols:
        return x
    return jnp.pad(x, ((0, rows - r), (0, cols - c)))


def _im2col_nhwc(x, kh, kw, stride, padding):
    """NHWC input -> (N*OH*OW, kh*kw*C) patches (K order = (kh, kw, Cin))."""
    # TODO(synk): patches are still materialized in HBM; fusing the (kh,kw)
    # strided window gather into the kernel (shifted matmuls over a haloed
    # NHWC tile / manual DMA for the stride-2 stages) is a further bandwidth
    # optimization, not a correctness issue.
    x = jnp.pad(x, ((0, 0), (padding, padding), (padding, padding), (0, 0)))
    n, hp, wp, c = x.shape
    oh = (hp - kh) // stride + 1
    ow = (wp - kw) // stride + 1
    cols = []
    for i in range(kh):
        for j in range(kw):
            cols.append(x[:, i:i + stride * oh:stride, j:j + stride * ow:stride, :])
    patches = jnp.concatenate(cols, axis=-1)  # (N, OH, OW, kh*kw*C)
    return patches.reshape(n * oh * ow, kh * kw * c), (n, oh, ow)


def _weight_to_mat(w_oihw):
    """(Cout, Cin, kh, kw) -> (kh*kw*Cin, Cout), matching im2col K ordering."""
    c_out, c_in, kh, kw = w_oihw.shape
    return jnp.transpose(w_oihw, (2, 3, 1, 0)).reshape(kh * kw * c_in, c_out)


# ----------------------------------------------------------------------------
# Pallas kernels
# ----------------------------------------------------------------------------
def _make_bias_kernel(c_out):
    """conv-as-GEMM + bias.  Weight N is lane-padded to 128 (VMEM only); the
    result is sliced to the true Cout before the (lane-masked) output store."""
    def kernel(p_ref, w_ref, b_ref, o_ref):
        y = jnp.dot(p_ref[...], w_ref[...], preferred_element_type=jnp.float32)
        y = y[:, :c_out] + b_ref[...]
        o_ref[...] = y.astype(o_ref.dtype)
    return kernel


def _make_bn_relu_kernel(c_out, eps):
    """Fully fused conv-as-GEMM + train-mode BatchNorm + ReLU.  The conv
    result stays resident in VMEM; stats use mean-subtracted variance."""
    def kernel(p_ref, w_ref, g_ref, b_ref, o_ref):
        y = jnp.dot(p_ref[...], w_ref[...], preferred_element_type=jnp.float32)
        y = y[:, :c_out]                                   # (M, Cout) f32
        mean = jnp.mean(y, axis=0, keepdims=True)          # (1, Cout)
        d = y - mean
        var = jnp.mean(d * d, axis=0, keepdims=True)       # biased, like PyTorch BN train
        scale = g_ref[...] * jax.lax.rsqrt(var + eps)
        o_ref[...] = jnp.maximum(d * scale + b_ref[...], 0.0).astype(o_ref.dtype)
    return kernel


# ----------------------------------------------------------------------------
# GEMM wrappers
# ----------------------------------------------------------------------------
def _conv_gemm_bias(patches, w_mat, bias, out_dtype):
    m, k = patches.shape
    c_out = w_mat.shape[1]
    kp = _round_up(k, 16)              # bf16 sublane pack only; no K->128 padding
    tm = min(512, _round_up(m, 8))     # large tiles: these layers are overhead-bound
    mp = _round_up(m, tm)

    p = _pad2d(patches, mp, kp)                         # already bf16
    w = _pad2d(w_mat, kp, 128).astype(jnp.bfloat16)     # lane-pad MXU N dim (tiny, VMEM only)
    b = bias.reshape(1, -1).astype(jnp.float32)

    out = pl.pallas_call(
        _make_bias_kernel(c_out),
        out_shape=jax.ShapeDtypeStruct((mp, c_out), out_dtype),
        grid_spec=pltpu.PrefetchScalarGridSpec(
            num_scalar_prefetch=0,
            grid=(mp // tm,),
            in_specs=[pl.BlockSpec((tm, kp), lambda i: (i, 0)),
                      pl.BlockSpec((kp, 128), lambda i: (0, 0)),
                      pl.BlockSpec((1, c_out), lambda i: (0, 0))],
            out_specs=pl.BlockSpec((tm, c_out), lambda i: (i, 0))),
        compiler_params=pltpu.CompilerParams(
            dimension_semantics=("parallel",),
            vmem_limit_bytes=_VMEM_LIMIT),
    )(p, w, b)
    return out if mp == m else out[:m]


def _conv_gemm_bn_relu(patches, w_mat, gamma, beta, out_dtype, eps=1e-5):
    # Single fused kernel; assumes one layer's conv output fits in VMEM (true
    # here: a few hundred KiB even on v7x's 64 MiB VMEM).
    # TODO(synk): for much larger M, a tiled two-pass (stats then affine) path
    # with a resident stats scratch would be needed.
    m, k = patches.shape
    c_out = w_mat.shape[1]
    kp = _round_up(k, 16)

    p = _pad2d(patches, m, kp)                          # already bf16
    w = _pad2d(w_mat, kp, 128).astype(jnp.bfloat16)
    g = gamma.reshape(1, -1).astype(jnp.float32)
    b = beta.reshape(1, -1).astype(jnp.float32)

    return pl.pallas_call(
        _make_bn_relu_kernel(c_out, eps),
        out_shape=jax.ShapeDtypeStruct((m, c_out), out_dtype),
        grid_spec=pltpu.PrefetchScalarGridSpec(
            num_scalar_prefetch=0,
            grid=(1,),
            in_specs=[pl.BlockSpec((m, kp), lambda i: (0, 0)),
                      pl.BlockSpec((kp, 128), lambda i: (0, 0)),
                      pl.BlockSpec((1, c_out), lambda i: (0, 0)),
                      pl.BlockSpec((1, c_out), lambda i: (0, 0))],
            out_specs=pl.BlockSpec((m, c_out), lambda i: (0, 0))),
        compiler_params=pltpu.CompilerParams(
            dimension_semantics=("arbitrary",),
            vmem_limit_bytes=_VMEM_LIMIT),
    )(p, w, g, b)


# ----------------------------------------------------------------------------
# conv layers (NHWC bf16 in / NHWC out)
# ----------------------------------------------------------------------------
def conv2d_bias(x_nhwc, w_oihw, b, stride, padding, out_dtype):
    c_out, _, kh, kw = w_oihw.shape
    patches, (n, oh, ow) = _im2col_nhwc(x_nhwc, kh, kw, stride, padding)
    out = _conv_gemm_bias(patches, _weight_to_mat(w_oihw), b, out_dtype)
    return out.reshape(n, oh, ow, c_out)


def conv2d_bn_relu(x_nhwc, w_oihw, gamma, beta, stride, padding, out_dtype):
    c_out, _, kh, kw = w_oihw.shape
    patches, (n, oh, ow) = _im2col_nhwc(x_nhwc, kh, kw, stride, padding)
    out = _conv_gemm_bn_relu(patches, _weight_to_mat(w_oihw), gamma, beta, out_dtype)
    return out.reshape(n, oh, ow, c_out)


# ----------------------------------------------------------------------------
# Encoder parameters + forward
# ----------------------------------------------------------------------------
def init_encoder_params(key, cfg):
    params = {}

    def conv_w(k_, c_out, c_in, ksz):
        fan_in = c_in * ksz * ksz
        bound = 1.0 / jnp.sqrt(fan_in)
        return jax.random.uniform(k_, (c_out, c_in, ksz, ksz), jnp.float32,
                                  -bound, bound)

    keys = jax.random.split(key, 1 + 3 * cfg["num_stage"])
    ki = 0

    c0 = cfg["stage_channels"][0]
    params["input"] = {
        "w": conv_w(keys[ki], c0, cfg["input_channel"], cfg["input_ker_size"]),
        "b": jnp.zeros((c0,), jnp.float32),
    }
    ki += 1

    for i in range(cfg["num_stage"]):
        c_in = cfg["stage_channels"][i] if i == 0 else cfg["stage_channels"][i - 1]
        c_out = cfg["stage_channels"][i]
        k = cfg["stage_ker_size"][i]
        params[f"stage{i}"] = {
            "w1": conv_w(keys[ki], c_out, c_in, k),       # conv(no bias)+BN+ReLU
            "gamma": jnp.ones((c_out,), jnp.float32),
            "beta": jnp.zeros((c_out,), jnp.float32),
            "w2": conv_w(keys[ki + 1], c_out, c_out, k),  # conv + bias
            "b2": jax.random.uniform(keys[ki + 2], (c_out,), jnp.float32,
                                     -0.1, 0.1),
        }
        ki += 3
    return params


def encoder_forward(params, cfg, x_nchw):
    # NCHW -> NHWC once at the boundary; cast to bf16 once (MXU input dtype).
    h = jnp.transpose(x_nchw, (0, 2, 3, 1)).astype(jnp.bfloat16)

    p = params["input"]
    # Input-conv output is dropped by forward() -> keep it bf16.
    h = conv2d_bias(h, p["w"], p["b"], 1, cfg["input_ker_padding"],
                    out_dtype=jnp.bfloat16)

    stage_outs = []
    for i in range(cfg["num_stage"]):
        p = params[f"stage{i}"]
        pad = cfg["stage_ker_padding"][i]
        y = conv2d_bn_relu(h, p["w1"], p["gamma"], p["beta"],
                           cfg["stage_stide"][i], pad, out_dtype=jnp.bfloat16)
        s = conv2d_bias(y, p["w2"], p["b2"], 1, pad, out_dtype=jnp.float32)
        stage_outs.append(s)
        h = s.astype(jnp.bfloat16)

    # forward(): output[2:][::-1] -> stage outputs, deepest first (as NCHW).
    return [jnp.transpose(o, (0, 3, 1, 2)) for o in stage_outs[::-1]]


if __name__ == "__main__":
    cfg = {
        "input_channel": 4,
        "stage_channels": [8, 16],
        "num_stage": 2,
        "input_ker_size": 3,
        "input_ker_padding": 1,
        "stage_ker_size": [3, 3],
        "stage_ker_padding": [1, 1],
        "stage_stide": [2, 2],
    }

    key = jax.random.PRNGKey(0)
    kx, kp = jax.random.split(key)
    x = jax.random.normal(kx, (2, cfg["input_channel"], 16, 16), jnp.float32)
    params = init_encoder_params(kp, cfg)

    run = jax.jit(lambda prm, inp: encoder_forward(prm, cfg, inp))
    outs = run(params, x)
    outs = [jax.block_until_ready(o) for o in outs]

    # sanity: deepest stage first
    assert outs[0].shape == (2, 16, 4, 4), outs[0].shape
    assert outs[1].shape == (2, 8, 8, 8), outs[1].shape
    assert all(bool(jnp.isfinite(o).all()) for o in outs)

    print("KERNEL_OK")
</pallas_src>

<mosaic_0001>
module attributes {stable_mosaic.version = 11 : i64} {
  func.func @kernel(%arg0: i32, %arg1: memref<512x48xbf16, #tpu.memory_space<vmem>>, %arg2: memref<48x128xbf16, #tpu.memory_space<vmem>>, %arg3: memref<1x8xf32, #tpu.memory_space<vmem>>, %arg4: memref<512x8xbf16, #tpu.memory_space<vmem>>) attributes {dimension_semantics = [#tpu.dimension_semantics<parallel>], iteration_bounds = array<i64: 1>, scalar_prefetch = 0 : i64, scratch_operands = 0 : i64, tpu.core_type = #tpu.core_type<tc>, window_params = [{transform_indices = @transform_0, window_bounds = array<i64: 512, 48>}, {pipeline_mode = #tpu.pipeline_mode<synchronous>, transform_indices = @transform_1, window_bounds = array<i64: 48, 128>}, {pipeline_mode = #tpu.pipeline_mode<synchronous>, transform_indices = @transform_2, window_bounds = array<i64: 1, 8>}, {transform_indices = @transform_3, window_bounds = array<i64: 512, 8>}]} {
    %c0 = arith.constant 0 : index
    %c0_0 = arith.constant 0 : index
    %0 = vector.load %arg1[%c0, %c0_0] : memref<512x48xbf16, #tpu.memory_space<vmem>>, vector<512x48xbf16>
    %c0_1 = arith.constant 0 : index
    %c0_2 = arith.constant 0 : index
    %1 = vector.load %arg2[%c0_1, %c0_2] : memref<48x128xbf16, #tpu.memory_space<vmem>>, vector<48x128xbf16>
    %cst = arith.constant dense<0.000000e+00> : vector<512x128xf32>
    %2 = tpu.matmul %0, %1, %cst {dimension_numbers = #tpu.dot_dimension_numbers<[1], [0], [0], [1], [0, 0, 1, 1], [], []>} : vector<512x48xbf16>, vector<48x128xbf16>, vector<512x128xf32> -> vector<512x128xf32>
    %3 = vector.extract_strided_slice %2 {offsets = [0, 0], sizes = [512, 8], strides = [1, 1]} : vector<512x128xf32> to vector<512x8xf32>
    %c0_3 = arith.constant 0 : index
    %c0_4 = arith.constant 0 : index
    %4 = vector.load %arg3[%c0_3, %c0_4] : memref<1x8xf32, #tpu.memory_space<vmem>>, vector<1x8xf32>
    %5 = vector.broadcast %4 : vector<1x8xf32> to vector<512x8xf32>
    %6 = arith.addf %3, %5 : vector<512x8xf32>
    %7 = arith.truncf %6 : vector<512x8xf32> to vector<512x8xbf16>
    %c0_5 = arith.constant 0 : index
    %c0_6 = arith.constant 0 : index
    %8 = vector.load %arg4[%c0_5, %c0_6] : memref<512x8xbf16, #tpu.memory_space<vmem>>, vector<512x8xbf16>
    tpu.vector_store %arg4[%c0_5, %c0_6], %7 {strides = array<i32>} : memref<512x8xbf16, #tpu.memory_space<vmem>>, vector<512x8xbf16>,
    return
  }
  func.func @transform_0(%arg0: i32) -> (i32, i32) {
    %c0_i32 = arith.constant 0 : i32
    %c0_i32_0 = arith.constant 0 : i32
    return %arg0, %c0_i32 : i32, i32
  }
  func.func @transform_1(%arg0: i32) -> (i32, i32) {
    %c0_i32 = arith.constant 0 : i32
    %c0_i32_0 = arith.constant 0 : i32
    %c0_i32_1 = arith.constant 0 : i32
    return %c0_i32, %c0_i32_0 : i32, i32
  }
  func.func @transform_2(%arg0: i32) -> (i32, i32) {
    %c0_i32 = arith.constant 0 : i32
    %c0_i32_0 = arith.constant 0 : i32
    %c0_i32_1 = arith.constant 0 : i32
    return %c0_i32, %c0_i32_0 : i32, i32
  }
  func.func @transform_3(%arg0: i32) -> (i32, i32) {
    %c0_i32 = arith.constant 0 : i32
    %c0_i32_0 = arith.constant 0 : i32
    return %arg0, %c0_i32 : i32, i32
  }
}

module attributes {stable_mosaic.version = 11 : i64} {
  func.func @kernel(%arg0: i32, %arg1: memref<128x80xbf16, #tpu.memory_space<vmem>>, %arg2: memref<80x128xbf16, #tpu.memory_space<vmem>>, %arg3: memref<1x8xf32, #tpu.memory_space<vmem>>, %arg4: memref<1x8xf32, #tpu.memory_space<vmem>>, %arg5: memref<128x8xbf16, #tpu.memory_space<vmem>>) attributes {dimension_semantics = [#tpu.dimension_semantics<arbitrary>], iteration_bounds = array<i64: 1>, scalar_prefetch = 0 : i64, scratch_operands = 0 : i64, tpu.core_type = #tpu.core_type<tc>, window_params = [{pipeline_mode = #tpu.pipeline_mode<synchronous>, transform_indices = @transform_0, window_bounds = array<i64: 128, 80>}, {pipeline_mode = #tpu.pipeline_mode<synchronous>, transform_indices = @transform_1, window_bounds = array<i64: 80, 128>}, {pipeline_mode = #tpu.pipeline_mode<synchronous>, transform_indices = @transform_2, window_bounds = array<i64: 1, 8>}, {pipeline_mode = #tpu.pipeline_mode<synchronous>, transform_indices = @transform_3, window_bounds = array<i64: 1, 8>}, {pipeline_mode = #tpu.pipeline_mode<synchronous>, transform_indices = @transform_4, window_bounds = array<i64: 128, 8>}]} {
    %c0 = arith.constant 0 : index
    %c0_0 = arith.constant 0 : index
    %0 = vector.load %arg1[%c0, %c0_0] : memref<128x80xbf16, #tpu.memory_space<vmem>>, vector<128x80xbf16>
    %c0_1 = arith.constant 0 : index
    %c0_2 = arith.constant 0 : index
    %1 = vector.load %arg2[%c0_1, %c0_2] : memref<80x128xbf16, #tpu.memory_space<vmem>>, vector<80x128xbf16>
    %cst = arith.constant dense<0.000000e+00> : vector<128x128xf32>
    %2 = tpu.matmul %0, %1, %cst {dimension_numbers = #tpu.dot_dimension_numbers<[1], [0], [0], [1], [0, 0, 1, 1], [], []>} : vector<128x80xbf16>, vector<80x128xbf16>, vector<128x128xf32> -> vector<128x128xf32>
    %3 = vector.extract_strided_slice %2 {offsets = [0, 0], sizes = [128, 8], strides = [1, 1]} : vector<128x128xf32> to vector<128x8xf32>
    %cst_3 = arith.constant dense<0.000000e+00> : vector<8xf32>
    %4 = vector.multi_reduction <add>, %3, %cst_3 [0] : vector<128x8xf32> to vector<8xf32>
    %5 = vector.shape_cast %4 : vector<8xf32> to vector<1x8xf32>
    %cst_4 = arith.constant 1.280000e+02 : f32
    %6 = vector.broadcast %cst_4 : f32 to vector<1x8xf32>
    %7 = arith.divf %5, %6 : vector<1x8xf32>
    %8 = vector.broadcast %7 : vector<1x8xf32> to vector<128x8xf32>
    %9 = arith.subf %3, %8 : vector<128x8xf32>
    %10 = arith.mulf %9, %9 : vector<128x8xf32>
    %cst_5 = arith.constant dense<0.000000e+00> : vector<8xf32>
    %11 = vector.multi_reduction <add>, %10, %cst_5 [0] : vector<128x8xf32> to vector<8xf32>
    %12 = vector.shape_cast %11 : vector<8xf32> to vector<1x8xf32>
    %cst_6 = arith.constant 1.280000e+02 : f32
    %13 = vector.broadcast %cst_6 : f32 to vector<1x8xf32>
    %14 = arith.divf %12, %13 : vector<1x8xf32>
    %c0_7 = arith.constant 0 : index
    %c0_8 = arith.constant 0 : index
    %15 = vector.load %arg3[%c0_7, %c0_8] : memref<1x8xf32, #tpu.memory_space<vmem>>, vector<1x8xf32>
    %cst_9 = arith.constant 9.99999974E-6 : f32
    %16 = vector.broadcast %cst_9 : f32 to vector<1x8xf32>
    %17 = arith.addf %14, %16 : vector<1x8xf32>
    %18 = math.rsqrt %17 : vector<1x8xf32>
    %19 = arith.mulf %15, %18 : vector<1x8xf32>
    %20 = vector.broadcast %19 : vector<1x8xf32> to vector<128x8xf32>
    %21 = arith.mulf %9, %20 : vector<128x8xf32>
    %c0_10 = arith.constant 0 : index
    %c0_11 = arith.constant 0 : index
    %22 = vector.load %arg4[%c0_10, %c0_11] : memref<1x8xf32, #tpu.memory_space<vmem>>, vector<1x8xf32>
    %23 = vector.broadcast %22 : vector<1x8xf32> to vector<128x8xf32>
    %24 = arith.addf %21, %23 : vector<128x8xf32>
    %cst_12 = arith.constant 0.000000e+00 : f32
    %25 = vector.broadcast %cst_12 : f32 to vector<128x8xf32>
    %26 = arith.maximumf %24, %25 : vector<128x8xf32>
    %27 = arith.truncf %26 : vector<128x8xf32> to vector<128x8xbf16>
    %c0_13 = arith.constant 0 : index
    %c0_14 = arith.constant 0 : index
    %28 = vector.load %arg5[%c0_13, %c0_14] : memref<128x8xbf16, #tpu.memory_space<vmem>>, vector<128x8xbf16>
    tpu.vector_store %arg5[%c0_13, %c0_14], %27 {strides = array<i32>} : memref<128x8xbf16, #tpu.memory_space<vmem>>, vector<128x8xbf16>,
    return
  }
  func.func @transform_0(%arg0: i32) -> (i32, i32) {
    %c0_i32 = arith.constant 0 : i32
    %c0_i32_0 = arith.constant 0 : i32
    %c0_i32_1 = arith.constant 0 : i32
    return %c0_i32, %c0_i32_0 : i32, i32
  }
  func.func @transform_1(%arg0: i32) -> (i32, i32) {
    %c0_i32 = arith.constant 0 : i32
    %c0_i32_0 = arith.constant 0 : i32
    %c0_i32_1 = arith.constant 0 : i32
    return %c0_i32, %c0_i32_0 : i32, i32
  }
  func.func @transform_2(%arg0: i32) -> (i32, i32) {
    %c0_i32 = arith.constant 0 : i32
    %c0_i32_0 = arith.constant 0 : i32
    %c0_i32_1 = arith.constant 0 : i32
    return %c0_i32, %c0_i32_0 : i32, i32
  }
  func.func @transform_3(%arg0: i32) -> (i32, i32) {
    %c0_i32 = arith.constant 0 : i32
    %c0_i32_0 = arith.constant 0 : i32
    %c0_i32_1 = arith.constant 0 : i32
    return %c0_i32, %c0_i32_0 : i32, i32
  }
  func.func @transform_4(%arg0: i32) -> (i32, i32) {
    %c0_i32 = arith.constant 0 : i32
    %c0_i32_0 = arith.constant 0 : i32
    %c0_i32_1 = arith.constant 0 : i32
    return %c0_i32, %c0_i32_0 : i32, i32
  }
}

module attributes {stable_mosaic.version = 11 : i64} {
  func.func @kernel(%arg0: i32, %arg1: memref<128x80xbf16, #tpu.memory_space<vmem>>, %arg2: memref<80x128xbf16, #tpu.memory_space<vmem>>, %arg3: memref<1x8xf32, #tpu.memory_space<vmem>>, %arg4: memref<128x8xf32, #tpu.memory_space<vmem>>) attributes {dimension_semantics = [#tpu.dimension_semantics<parallel>], iteration_bounds = array<i64: 1>, scalar_prefetch = 0 : i64, scratch_operands = 0 : i64, tpu.core_type = #tpu.core_type<tc>, window_params = [{transform_indices = @transform_0, window_bounds = array<i64: 128, 80>}, {pipeline_mode = #tpu.pipeline_mode<synchronous>, transform_indices = @transform_1, window_bounds = array<i64: 80, 128>}, {pipeline_mode = #tpu.pipeline_mode<synchronous>, transform_indices = @transform_2, window_bounds = array<i64: 1, 8>}, {transform_indices = @transform_3, window_bounds = array<i64: 128, 8>}]} {
    %c0 = arith.constant 0 : index
    %c0_0 = arith.constant 0 : index
    %0 = vector.load %arg1[%c0, %c0_0] : memref<128x80xbf16, #tpu.memory_space<vmem>>, vector<128x80xbf16>
    %c0_1 = arith.constant 0 : index
    %c0_2 = arith.constant 0 : index
    %1 = vector.load %arg2[%c0_1, %c0_2] : memref<80x128xbf16, #tpu.memory_space<vmem>>, vector<80x128xbf16>
    %cst = arith.constant dense<0.000000e+00> : vector<128x128xf32>
    %2 = tpu.matmul %0, %1, %cst {dimension_numbers = #tpu.dot_dimension_numbers<[1], [0], [0], [1], [0, 0, 1, 1], [], []>} : vector<128x80xbf16>, vector<80x128xbf16>, vector<128x128xf32> -> vector<128x128xf32>
    %3 = vector.extract_strided_slice %2 {offsets = [0, 0], sizes = [128, 8], strides = [1, 1]} : vector<128x128xf32> to vector<128x8xf32>
    %c0_3 = arith.constant 0 : index
    %c0_4 = arith.constant 0 : index
    %4 = vector.load %arg3[%c0_3, %c0_4] : memref<1x8xf32, #tpu.memory_space<vmem>>, vector<1x8xf32>
    %5 = vector.broadcast %4 : vector<1x8xf32> to vector<128x8xf32>
    %6 = arith.addf %3, %5 : vector<128x8xf32>
    %c0_5 = arith.constant 0 : index
    %c0_6 = arith.constant 0 : index
    %7 = vector.load %arg4[%c0_5, %c0_6] : memref<128x8xf32, #tpu.memory_space<vmem>>, vector<128x8xf32>
    tpu.vector_store %arg4[%c0_5, %c0_6], %6 {strides = array<i32>} : memref<128x8xf32, #tpu.memory_space<vmem>>, vector<128x8xf32>,
    return
  }
  func.func @transform_0(%arg0: i32) -> (i32, i32) {
    %c0_i32 = arith.constant 0 : i32
    %c0_i32_0 = arith.constant 0 : i32
    return %arg0, %c0_i32 : i32, i32
  }
  func.func @transform_1(%arg0: i32) -> (i32, i32) {
    %c0_i32 = arith.constant 0 : i32
    %c0_i32_0 = arith.constant 0 : i32
    %c0_i32_1 = arith.constant 0 : i32
    return %c0_i32, %c0_i32_0 : i32, i32
  }
  func.func @transform_2(%arg0: i32) -> (i32, i32) {
    %c0_i32 = arith.constant 0 : i32
    %c0_i32_0 = arith.constant 0 : i32
    %c0_i32_1 = arith.constant 0 : i32
    return %c0_i32, %c0_i32_0 : i32, i32
  }
  func.func @transform_3(%arg0: i32) -> (i32, i32) {
    %c0_i32 = arith.constant 0 : i32
    %c0_i32_0 = arith.constant 0 : i32
    return %arg0, %c0_i32 : i32, i32
  }
}

module attributes {stable_mosaic.version = 11 : i64} {
  func.func @kernel(%arg0: i32, %arg1: memref<32x80xbf16, #tpu.memory_space<vmem>>, %arg2: memref<80x128xbf16, #tpu.memory_space<vmem>>, %arg3: memref<1x16xf32, #tpu.memory_space<vmem>>, %arg4: memref<1x16xf32, #tpu.memory_space<vmem>>, %arg5: memref<32x16xbf16, #tpu.memory_space<vmem>>) attributes {dimension_semantics = [#tpu.dimension_semantics<arbitrary>], iteration_bounds = array<i64: 1>, scalar_prefetch = 0 : i64, scratch_operands = 0 : i64, tpu.core_type = #tpu.core_type<tc>, window_params = [{pipeline_mode = #tpu.pipeline_mode<synchronous>, transform_indices = @transform_0, window_bounds = array<i64: 32, 80>}, {pipeline_mode = #tpu.pipeline_mode<synchronous>, transform_indices = @transform_1, window_bounds = array<i64: 80, 128>}, {pipeline_mode = #tpu.pipeline_mode<synchronous>, transform_indices = @transform_2, window_bounds = array<i64: 1, 16>}, {pipeline_mode = #tpu.pipeline_mode<synchronous>, transform_indices = @transform_3, window_bounds = array<i64: 1, 16>}, {pipeline_mode = #tpu.pipeline_mode<synchronous>, transform_indices = @transform_4, window_bounds = array<i64: 32, 16>}]} {
    %c0 = arith.constant 0 : index
    %c0_0 = arith.constant 0 : index
    %0 = vector.load %arg1[%c0, %c0_0] : memref<32x80xbf16, #tpu.memory_space<vmem>>, vector<32x80xbf16>
    %c0_1 = arith.constant 0 : index
    %c0_2 = arith.constant 0 : index
    %1 = vector.load %arg2[%c0_1, %c0_2] : memref<80x128xbf16, #tpu.memory_space<vmem>>, vector<80x128xbf16>
    %cst = arith.constant dense<0.000000e+00> : vector<32x128xf32>
    %2 = tpu.matmul %0, %1, %cst {dimension_numbers = #tpu.dot_dimension_numbers<[1], [0], [0], [1], [0, 0, 1, 1], [], []>} : vector<32x80xbf16>, vector<80x128xbf16>, vector<32x128xf32> -> vector<32x128xf32>
    %3 = vector.extract_strided_slice %2 {offsets = [0, 0], sizes = [32, 16], strides = [1, 1]} : vector<32x128xf32> to vector<32x16xf32>
    %cst_3 = arith.constant dense<0.000000e+00> : vector<16xf32>
    %4 = vector.multi_reduction <add>, %3, %cst_3 [0] : vector<32x16xf32> to vector<16xf32>
    %5 = vector.shape_cast %4 : vector<16xf32> to vector<1x16xf32>
    %cst_4 = arith.constant 3.200000e+01 : f32
    %6 = vector.broadcast %cst_4 : f32 to vector<1x16xf32>
    %7 = arith.divf %5, %6 : vector<1x16xf32>
    %8 = vector.broadcast %7 : vector<1x16xf32> to vector<32x16xf32>
    %9 = arith.subf %3, %8 : vector<32x16xf32>
    %10 = arith.mulf %9, %9 : vector<32x16xf32>
    %cst_5 = arith.constant dense<0.000000e+00> : vector<16xf32>
    %11 = vector.multi_reduction <add>, %10, %cst_5 [0] : vector<32x16xf32> to vector<16xf32>
    %12 = vector.shape_cast %11 : vector<16xf32> to vector<1x16xf32>
    %cst_6 = arith.constant 3.200000e+01 : f32
    %13 = vector.broadcast %cst_6 : f32 to vector<1x16xf32>
    %14 = arith.divf %12, %13 : vector<1x16xf32>
    %c0_7 = arith.constant 0 : index
    %c0_8 = arith.constant 0 : index
    %15 = vector.load %arg3[%c0_7, %c0_8] : memref<1x16xf32, #tpu.memory_space<vmem>>, vector<1x16xf32>
    %cst_9 = arith.constant 9.99999974E-6 : f32
    %16 = vector.broadcast %cst_9 : f32 to vector<1x16xf32>
    %17 = arith.addf %14, %16 : vector<1x16xf32>
    %18 = math.rsqrt %17 : vector<1x16xf32>
    %19 = arith.mulf %15, %18 : vector<1x16xf32>
    %20 = vector.broadcast %19 : vector<1x16xf32> to vector<32x16xf32>
    %21 = arith.mulf %9, %20 : vector<32x16xf32>
    %c0_10 = arith.constant 0 : index
    %c0_11 = arith.constant 0 : index
    %22 = vector.load %arg4[%c0_10, %c0_11] : memref<1x16xf32, #tpu.memory_space<vmem>>, vector<1x16xf32>
    %23 = vector.broadcast %22 : vector<1x16xf32> to vector<32x16xf32>
    %24 = arith.addf %21, %23 : vector<32x16xf32>
    %cst_12 = arith.constant 0.000000e+00 : f32
    %25 = vector.broadcast %cst_12 : f32 to vector<32x16xf32>
    %26 = arith.maximumf %24, %25 : vector<32x16xf32>
    %27 = arith.truncf %26 : vector<32x16xf32> to vector<32x16xbf16>
    %c0_13 = arith.constant 0 : index
    %c0_14 = arith.constant 0 : index
    %28 = vector.load %arg5[%c0_13, %c0_14] : memref<32x16xbf16, #tpu.memory_space<vmem>>, vector<32x16xbf16>
    tpu.vector_store %arg5[%c0_13, %c0_14], %27 {strides = array<i32>} : memref<32x16xbf16, #tpu.memory_space<vmem>>, vector<32x16xbf16>,
    return
  }
  func.func @transform_0(%arg0: i32) -> (i32, i32) {
    %c0_i32 = arith.constant 0 : i32
    %c0_i32_0 = arith.constant 0 : i32
    %c0_i32_1 = arith.constant 0 : i32
    return %c0_i32, %c0_i32_0 : i32, i32
  }
  func.func @transform_1(%arg0: i32) -> (i32, i32) {
    %c0_i32 = arith.constant 0 : i32
    %c0_i32_0 = arith.constant 0 : i32
    %c0_i32_1 = arith.constant 0 : i32
    return %c0_i32, %c0_i32_0 : i32, i32
  }
  func.func @transform_2(%arg0: i32) -> (i32, i32) {
    %c0_i32 = arith.constant 0 : i32
    %c0_i32_0 = arith.constant 0 : i32
    %c0_i32_1 = arith.constant 0 : i32
    return %c0_i32, %c0_i32_0 : i32, i32
  }
  func.func @transform_3(%arg0: i32) -> (i32, i32) {
    %c0_i32 = arith.constant 0 : i32
    %c0_i32_0 = arith.constant 0 : i32
    %c0_i32_1 = arith.constant 0 : i32
    return %c0_i32, %c0_i32_0 : i32, i32
  }
  func.func @transform_4(%arg0: i32) -> (i32, i32) {
    %c0_i32 = arith.constant 0 : i32
    %c0_i32_0 = arith.constant 0 : i32
    %c0_i32_1 = arith.constant 0 : i32
    return %c0_i32, %c0_i32_0 : i32, i32
  }
}

module attributes {stable_mosaic.version = 11 : i64} {
  func.func @kernel(%arg0: i32, %arg1: memref<32x144xbf16, #tpu.memory_space<vmem>>, %arg2: memref<144x128xbf16, #tpu.memory_space<vmem>>, %arg3: memref<1x16xf32, #tpu.memory_space<vmem>>, %arg4: memref<32x16xf32, #tpu.memory_space<vmem>>) attributes {dimension_semantics = [#tpu.dimension_semantics<parallel>], iteration_bounds = array<i64: 1>, scalar_prefetch = 0 : i64, scratch_operands = 0 : i64, tpu.core_type = #tpu.core_type<tc>, window_params = [{transform_indices = @transform_0, window_bounds = array<i64: 32, 144>}, {pipeline_mode = #tpu.pipeline_mode<synchronous>, transform_indices = @transform_1, window_bounds = array<i64: 144, 128>}, {pipeline_mode = #tpu.pipeline_mode<synchronous>, transform_indices = @transform_2, window_bounds = array<i64: 1, 16>}, {transform_indices = @transform_3, window_bounds = array<i64: 32, 16>}]} {
    %c0 = arith.constant 0 : index
    %c0_0 = arith.constant 0 : index
    %0 = vector.load %arg1[%c0, %c0_0] : memref<32x144xbf16, #tpu.memory_space<vmem>>, vector<32x144xbf16>
    %c0_1 = arith.constant 0 : index
    %c0_2 = arith.constant 0 : index
    %1 = vector.load %arg2[%c0_1, %c0_2] : memref<144x128xbf16, #tpu.memory_space<vmem>>, vector<144x128xbf16>
    %cst = arith.constant dense<0.000000e+00> : vector<32x128xf32>
    %2 = tpu.matmul %0, %1, %cst {dimension_numbers = #tpu.dot_dimension_numbers<[1], [0], [0], [1], [0, 0, 1, 1], [], []>} : vector<32x144xbf16>, vector<144x128xbf16>, vector<32x128xf32> -> vector<32x128xf32>
    %3 = vector.extract_strided_slice %2 {offsets = [0, 0], sizes = [32, 16], strides = [1, 1]} : vector<32x128xf32> to vector<32x16xf32>
    %c0_3 = arith.constant 0 : index
    %c0_4 = arith.constant 0 : index
    %4 = vector.load %arg3[%c0_3, %c0_4] : memref<1x16xf32, #tpu.memory_space<vmem>>, vector<1x16xf32>
    %5 = vector.broadcast %4 : vector<1x16xf32> to vector<32x16xf32>
    %6 = arith.addf %3, %5 : vector<32x16xf32>
    %c0_5 = arith.constant 0 : index
    %c0_6 = arith.constant 0 : index
    %7 = vector.load %arg4[%c0_5, %c0_6] : memref<32x16xf32, #tpu.memory_space<vmem>>, vector<32x16xf32>
    tpu.vector_store %arg4[%c0_5, %c0_6], %6 {strides = array<i32>} : memref<32x16xf32, #tpu.memory_space<vmem>>, vector<32x16xf32>,
    return
  }
  func.func @transform_0(%arg0: i32) -> (i32, i32) {
    %c0_i32 = arith.constant 0 : i32
    %c0_i32_0 = arith.constant 0 : i32
    return %arg0, %c0_i32 : i32, i32
  }
  func.func @transform_1(%arg0: i32) -> (i32, i32) {
    %c0_i32 = arith.constant 0 : i32
    %c0_i32_0 = arith.constant 0 : i32
    %c0_i32_1 = arith.constant 0 : i32
    return %c0_i32, %c0_i32_0 : i32, i32
  }
  func.func @transform_2(%arg0: i32) -> (i32, i32) {
    %c0_i32 = arith.constant 0 : i32
    %c0_i32_0 = arith.constant 0 : i32
    %c0_i32_1 = arith.constant 0 : i32
    return %c0_i32, %c0_i32_0 : i32, i32
  }
  func.func @transform_3(%arg0: i32) -> (i32, i32) {
    %c0_i32 = arith.constant 0 : i32
    %c0_i32_0 = arith.constant 0 : i32
    return %arg0, %c0_i32 : i32, i32
  }
}

</mosaic_0001>

<llo_original>
// kernel: _lambda_.5
$region0: #{_lambda_.5}
  #allocation0 [shape = 'u32[]', space=smem, size = 0x4, offset = 0x4, fixed_abs, tag = 'smem constant byte address 0x4 - core index']
  #allocation1 [shape = 'u32[144,128]{1,0:T(1,128)}', space=vmem, size = 0x12000, scoped, tag = 'internal scratch']
  %s0 = inlined_call_operand.vmem [shape: bf16[512,48], index: 0, kind: input, shape index: {}]
  %s1 = inlined_call_operand.vmem [shape: bf16[48,128], index: 1, kind: input, shape index: {}]
  %s2 = inlined_call_operand.vmem [shape: f32[1,8], index: 2, kind: input, shape index: {}]
  %s3 = inlined_call_operand.vmem [shape: bf16[512,8], index: 3, kind: output, shape index: {}]
  %s4 = sld [smem:[#allocation0]]
  $region22: #{_lambda_.5} parent=0
    _
  %s6 = ssub.s32 1, %s4
  %s7 = scalar_select 0, %s6, %s4
  // Predicated region
  $region2: #{_lambda_.5} parent=0 // pred_check
    _
  $region3: #{_lambda_.5} parent=0 // pred_check_branch
    %9 = sbr.rel (0) target = $region5
  $region4: #{_lambda_.5} parent=0 // pred_region
    _
  $region5: #{_lambda_.5} parent=0 // pred_fallthru
    _
  // Predicated region
  $region6: #{_lambda_.5} parent=0 // pred_check
    _
  $region7: #{_lambda_.5} parent=0 // pred_check_branch
    %11 = sbr.rel (0) target = $region9
  $region8: #{_lambda_.5} parent=0 // pred_region
    _
  $region9: #{_lambda_.5} parent=0 // pred_fallthru
    _
  // Predicated region
  $region10: #{_lambda_.5} parent=0 // pred_check
    _
  $region11: #{_lambda_.5} parent=0 // pred_check_branch
    %13 = sbr.rel (0) target = $region13
  $region12: #{_lambda_.5} parent=0 // pred_region
    _
  $region13: #{_lambda_.5} parent=0 // pred_fallthru
    _
  %v15 = vld [vmem:[%s0] sm:$0xf]
  %v16 = vld [vmem:[%s0 + $0x4] sm:$0xf]
  %v17 = vld [vmem:[%s0 + $0x8] sm:$0xf]
  %v18 = vld [vmem:[%s0 + $0xc] sm:$0xf]
  %v19 = vld [vmem:[%s0 + $0x10] sm:$0xf]
  %v20 = vld [vmem:[%s0 + $0x14] sm:$0xf]
  %v21 = vld [vmem:[%s0 + $0x18] sm:$0xf]
  %v22 = vld [vmem:[%s0 + $0x1c] sm:$0xf]
  %v23 = vld [vmem:[%s0 + $0x20] sm:$0xf]
  %v24 = vld [vmem:[%s0 + $0x24] sm:$0xf]
  %v25 = vld [vmem:[%s0 + $0x28] sm:$0xf]
  %v26 = vld [vmem:[%s0 + $0x2c] sm:$0xf]
  %v27 = vld [vmem:[%s0 + $0x30] sm:$0xf]
  %v28 = vld [vmem:[%s0 + $0x34] sm:$0xf]
  %v29 = vld [vmem:[%s0 + $0x38] sm:$0xf]
  %v30 = vld [vmem:[%s0 + $0x3c] sm:$0xf]
  %v31 = vld [vmem:[%s0 + $0x40] sm:$0xf]
  %v32 = vld [vmem:[%s0 + $0x44] sm:$0xf]
  %v33 = vld [vmem:[%s0 + $0x48] sm:$0xf]
  %v34 = vld [vmem:[%s0 + $0x4c] sm:$0xf]
  %v35 = vld [vmem:[%s0 + $0x50] sm:$0xf]
  %v36 = vld [vmem:[%s0 + $0x54] sm:$0xf]
  %v37 = vld [vmem:[%s0 + $0x58] sm:$0xf]
  %v38 = vld [vmem:[%s0 + $0x5c] sm:$0xf]
  %v39 = vld [vmem:[%s0 + $0x60] sm:$0xf]
  %v40 = vld [vmem:[%s0 + $0x64] sm:$0xf]
  %v41 = vld [vmem:[%s0 + $0x68] sm:$0xf]
  %v42 = vld [vmem:[%s0 + $0x6c] sm:$0xf]
  %v43 = vld [vmem:[%s0 + $0x70] sm:$0xf]
  %v44 = vld [vmem:[%s0 + $0x74] sm:$0xf]
  %v45 = vld [vmem:[%s0 + $0x78] sm:$0xf]
  %v46 = vld [vmem:[%s0 + $0x7c] sm:$0xf]
  %v47 = vld [vmem:[%s0 + $0x80] sm:$0xf]
  %v48 = vld [vmem:[%s0 + $0x84] sm:$0xf]
  %v49 = vld [vmem:[%s0 + $0x88] sm:$0xf]
  %v50 = vld [vmem:[%s0 + $0x8c] sm:$0xf]
  %v51 = vld [vmem:[%s0 + $0x90] sm:$0xf]
  %v52 = vld [vmem:[%s0 + $0x94] sm:$0xf]
  %v53 = vld [vmem:[%s0 + $0x98] sm:$0xf]
  %v54 = vld [vmem:[%s0 + $0x9c] sm:$0xf]
  %v55 = vld [vmem:[%s0 + $0xa0] sm:$0xf]
  %v56 = vld [vmem:[%s0 + $0xa4] sm:$0xf]
  %v57 = vld [vmem:[%s0 + $0xa8] sm:$0xf]
  %v58 = vld [vmem:[%s0 + $0xac] sm:$0xf]
  %v59 = vld [vmem:[%s0 + $0xb0] sm:$0xf]
  %v60 = vld [vmem:[%s0 + $0xb4] sm:$0xf]
  %v61 = vld [vmem:[%s0 + $0xb8] sm:$0xf]
  %v62 = vld [vmem:[%s0 + $0xbc] sm:$0xf]
  %v63 = vld [vmem:[%s0 + $0xc0] sm:$0xf]
  %v64 = vld [vmem:[%s0 + $0xc4] sm:$0xf]
  %v65 = vld [vmem:[%s0 + $0xc8] sm:$0xf]
  %v66 = vld [vmem:[%s0 + $0xcc] sm:$0xf]
  %v67 = vld [vmem:[%s0 + $0xd0] sm:$0xf]
  %v68 = vld [vmem:[%s0 + $0xd4] sm:$0xf]
  %v69 = vld [vmem:[%s0 + $0xd8] sm:$0xf]
  %v70 = vld [vmem:[%s0 + $0xdc] sm:$0xf]
  %v71 = vld [vmem:[%s0 + $0xe0] sm:$0xf]
  %v72 = vld [vmem:[%s0 + $0xe4] sm:$0xf]
  %v73 = vld [vmem:[%s0 + $0xe8] sm:$0xf]
  %v74 = vld [vmem:[%s0 + $0xec] sm:$0xf]
  %v75 = vld [vmem:[%s0 + $0xf0] sm:$0xf]
  %v76 = vld [vmem:[%s0 + $0xf4] sm:$0xf]
  %v77 = vld [vmem:[%s0 + $0xf8] sm:$0xf]
  %v78 = vld [vmem:[%s0 + $0xfc] sm:$0xf]
  %v79 = vld [vmem:[%s1] sm:$0xf]
  %v80 = vld [vmem:[%s1 + $0x4] sm:$0xf]
  %v81 = vld [vmem:[%s1 + $0x8] sm:$0xf]
  %v82 = vld [vmem:[%s1 + $0xc] sm:$0xf]
  %v83 = vld [vmem:[%s1 + $0x10] sm:$0xf]
  %v84 = vld [vmem:[%s1 + $0x14] sm:$0xf]
  %v149 = vunpack.c.l.b16 %v15
  %v150 = vunpack.c.l.b16 %v16
  %v151 = vunpack.c.l.b16 %v17
  %v152 = vunpack.c.l.b16 %v18
  %v153 = vunpack.c.l.b16 %v19
  %v154 = vunpack.c.l.b16 %v20
  %v155 = vunpack.c.l.b16 %v21
  %v156 = vunpack.c.l.b16 %v22
  %v157 = vunpack.c.l.b16 %v23
  %v158 = vunpack.c.l.b16 %v24
  %v159 = vunpack.c.l.b16 %v25
  %v160 = vunpack.c.l.b16 %v26
  %v161 = vunpack.c.l.b16 %v27
  %v162 = vunpack.c.l.b16 %v28
  %v163 = vunpack.c.l.b16 %v29
  %v164 = vunpack.c.l.b16 %v30
  %v165 = vunpack.c.l.b16 %v31
  %v166 = vunpack.c.l.b16 %v32
  %v167 = vunpack.c.l.b16 %v33
  %v168 = vunpack.c.l.b16 %v34
  %v169 = vunpack.c.l.b16 %v35
  %v170 = vunpack.c.l.b16 %v36
  %v171 = vunpack.c.l.b16 %v37
  %v172 = vunpack.c.l.b16 %v38
  %v173 = vunpack.c.l.b16 %v39
  %v174 = vunpack.c.l.b16 %v40
  %v175 = vunpack.c.l.b16 %v41
  %v176 = vunpack.c.l.b16 %v42
  %v177 = vunpack.c.l.b16 %v43
  %v178 = vunpack.c.l.b16 %v44
  %v179 = vunpack.c.l.b16 %v45
  %v180 = vunpack.c.l.b16 %v46
  %v181 = vunpack.c.l.b16 %v47
  %v182 = vunpack.c.l.b16 %v48
  %v183 = vunpack.c.l.b16 %v49
  %v184 = vunpack.c.l.b16 %v50
  %v185 = vunpack.c.l.b16 %v51
  %v186 = vunpack.c.l.b16 %v52
  %v187 = vunpack.c.l.b16 %v53
  %v188 = vunpack.c.l.b16 %v54
  %v189 = vunpack.c.l.b16 %v55
  %v190 = vunpack.c.l.b16 %v56
  %v191 = vunpack.c.l.b16 %v57
  %v192 = vunpack.c.l.b16 %v58
  %v193 = vunpack.c.l.b16 %v59
  %v194 = vunpack.c.l.b16 %v60
  %v195 = vunpack.c.l.b16 %v61
  %v196 = vunpack.c.l.b16 %v62
  %v197 = vunpack.c.l.b16 %v63
  %v198 = vunpack.c.l.b16 %v64
  %v199 = vunpack.c.l.b16 %v65
  %v200 = vunpack.c.l.b16 %v66
  %v201 = vunpack.c.l.b16 %v67
  %v202 = vunpack.c.l.b16 %v68
  %v203 = vunpack.c.l.b16 %v69
  %v204 = vunpack.c.l.b16 %v70
  %v205 = vunpack.c.l.b16 %v71
  %v206 = vunpack.c.l.b16 %v72
  %v207 = vunpack.c.l.b16 %v73
  %v208 = vunpack.c.l.b16 %v74
  %v209 = vunpack.c.l.b16 %v75
  %v210 = vunpack.c.l.b16 %v76
  %v211 = vunpack.c.l.b16 %v77
  %v212 = vunpack.c.l.b16 %v78
  %v213 = vpack.c.b16 %v150, %v149
  %v214 = vpack.c.b16 %v152, %v151
  %v215 = vpack.c.b16 %v154, %v153
  %v216 = vpack.c.b16 %v156, %v155
  %v217 = vpack.c.b16 %v158, %v157
  %v218 = vpack.c.b16 %v160, %v159
  %v219 = vpack.c.b16 %v162, %v161
  %v220 = vpack.c.b16 %v164, %v163
  %v221 = vpack.c.b16 %v166, %v165
  %v222 = vpack.c.b16 %v168, %v167
  %v223 = vpack.c.b16 %v170, %v169
  %v224 = vpack.c.b16 %v172, %v171
  %v225 = vpack.c.b16 %v174, %v173
  %v226 = vpack.c.b16 %v176, %v175
  %v227 = vpack.c.b16 %v178, %v177
  %v228 = vpack.c.b16 %v180, %v179
  %v229 = vpack.c.b16 %v182, %v181
  %v230 = vpack.c.b16 %v184, %v183
  %v231 = vpack.c.b16 %v186, %v185
  %v232 = vpack.c.b16 %v188, %v187
  %v233 = vpack.c.b16 %v190, %v189
  %v234 = vpack.c.b16 %v192, %v191
  %v235 = vpack.c.b16 %v194, %v193
  %v236 = vpack.c.b16 %v196, %v195
  %v237 = vpack.c.b16 %v198, %v197
  %v238 = vpack.c.b16 %v200, %v199
  %v239 = vpack.c.b16 %v202, %v201
  %v240 = vpack.c.b16 %v204, %v203
  %v241 = vpack.c.b16 %v206, %v205
  %v242 = vpack.c.b16 %v208, %v207
  %v243 = vpack.c.b16 %v210, %v209
  %v244 = vpack.c.b16 %v212, %v211
  %v251 = vunpack.c.l.b16 %v79
  %v252 = vunpack.c.l.b16 %v80
  %v253 = vunpack.c.l.b16 %v81
  %v254 = vunpack.c.l.b16 %v82
  %v255 = vunpack.c.l.b16 %v83
  %v256 = vunpack.c.l.b16 %v84
  %v257 = vpack.c.b16 %v252, %v251
  %v258 = vpack.c.b16 %v254, %v253
  %v259 = vpack.c.b16 %v256, %v255
  %vm263 = vcmask 392192
  %v265 = vsel %vm263, %v213, 0
  %v268 = vsel %vm263, %v214, 0
  %v271 = vsel %vm263, %v215, 0
  %v274 = vsel %vm263, %v216, 0
  %v277 = vsel %vm263, %v217, 0
  %v280 = vsel %vm263, %v218, 0
  %v283 = vsel %vm263, %v219, 0
  %v286 = vsel %vm263, %v220, 0
  %v289 = vsel %vm263, %v221, 0
  %v292 = vsel %vm263, %v222, 0
  %v295 = vsel %vm263, %v223, 0
  %v298 = vsel %vm263, %v224, 0
  %v301 = vsel %vm263, %v225, 0
  %v304 = vsel %vm263, %v226, 0
  %v307 = vsel %vm263, %v227, 0
  %v310 = vsel %vm263, %v228, 0
  %v313 = vsel %vm263, %v229, 0
  %v316 = vsel %vm263, %v230, 0
  %v319 = vsel %vm263, %v231, 0
  %v322 = vsel %vm263, %v232, 0
  %v325 = vsel %vm263, %v233, 0
  %v328 = vsel %vm263, %v234, 0
  %v331 = vsel %vm263, %v235, 0
  %v334 = vsel %vm263, %v236, 0
  %v337 = vsel %vm263, %v237, 0
  %v340 = vsel %vm263, %v238, 0
  %v343 = vsel %vm263, %v239, 0
  %v346 = vsel %vm263, %v240, 0
  %v349 = vsel %vm263, %v241, 0
  %v352 = vsel %vm263, %v242, 0
  %v355 = vsel %vm263, %v243, 0
  %v358 = vsel %vm263, %v244, 0
  %360 = vmatprep.subr.bf16.mxu0 0
  %361 = vmatpush1.bf16.msra.mxu0 0
  %362 = vmatprep.subr.bf16.mxu0 0
  %363 = vmatpush1.bf16.msra.mxu0 0
  %364 = vmatprep.subr.bf16.mxu0 0
  %365 = vmatpush1.bf16.msra.mxu0 0
  %366 = vmatprep.subr.bf16.mxu0 0
  %367 = vmatpush1.bf16.msra.mxu0 0
  %368 = vmatprep.subr.bf16.mxu0 0
  %369 = vmatpush1.bf16.msra.mxu0 0
  %370 = vmatprep.subr.bf16.mxu0 0
  %371 = vmatpush1.bf16.msra.mxu0 %v259
  %372 = vmatprep.subr.bf16.mxu0 0
  %373 = vmatpush1.bf16.msra.mxu0 %v258
  %374 = vmatprep.subr.bf16.mxu0 0
  %375 = vmatpush1.bf16.msra.mxu0 %v257
  %376 = vmatprep.subr.bf16.mxu0 0
  %377 = vmatpush2.bf16.msra.mxu0 0
  %378 = vmatprep.subr.bf16.mxu0 0
  %379 = vmatpush2.bf16.msra.mxu0 0
  %380 = vmatprep.subr.bf16.mxu0 0
  %381 = vmatpush2.bf16.msra.mxu0 0
  %382 = vmatprep.subr.bf16.mxu0 0
  %383 = vmatpush2.bf16.msra.mxu0 0
  %384 = vmatprep.subr.bf16.mxu0 0
  %385 = vmatpush2.bf16.msra.mxu0 0
  %386 = vmatprep.subr.bf16.mxu0 0
  %387 = vmatpush2.bf16.msra.mxu0 0
  %388 = vmatprep.subr.bf16.mxu0 0
  %389 = vmatpush2.bf16.msra.mxu0 0
  %390 = vmatprep.subr.bf16.mxu0 0
  %391 = vmatpush2.bf16.msra.mxu0 0
  %392 = vmatprep.mubr.bf16.mxu0 0
  %393 = vmatmul.mubr.bf16.gmra.mxu0 %v265
  %v394 = vpop.f32.mrf.mxu0
  %v395 = vadd.f32 0.0, %v394
  %v396 = vpop.f32.mrf.mxu0
  %v397 = vpop.f32.mrf.mxu0
  %v398 = vadd.f32 0.0, %v397
  %v399 = vpop.f32.mrf.mxu0
  %400 = vmatprep.mubr.bf16.mxu0 0
  %401 = vmatmul.mubr.bf16.gmra.mxu0 %v268
  %v402 = vpop.f32.mrf.mxu0
  %v403 = vadd.f32 0.0, %v402
  %v404 = vpop.f32.mrf.mxu0
  %v405 = vpop.f32.mrf.mxu0
  %v406 = vadd.f32 0.0, %v405
  %v407 = vpop.f32.mrf.mxu0
  %408 = vmatprep.mubr.bf16.mxu0 0
  %409 = vmatmul.mubr.bf16.gmra.mxu0 %v271
  %v410 = vpop.f32.mrf.mxu0
  %v411 = vadd.f32 0.0, %v410
  %v412 = vpop.f32.mrf.mxu0
  %v413 = vpop.f32.mrf.mxu0
  %v414 = vadd.f32 0.0, %v413
  %v415 = vpop.f32.mrf.mxu0
  %416 = vmatprep.mubr.bf16.mxu0 0
  %417 = vmatmul.mubr.bf16.gmra.mxu0 %v274
  %v418 = vpop.f32.mrf.mxu0
  %v419 = vadd.f32 0.0, %v418
  %v420 = vpop.f32.mrf.mxu0
  %v421 = vpop.f32.mrf.mxu0
  %v422 = vadd.f32 0.0, %v421
  %v423 = vpop.f32.mrf.mxu0
  %424 = vmatprep.mubr.bf16.mxu0 0
  %425 = vmatmul.mubr.bf16.gmra.mxu0 %v277
  %v426 = vpop.f32.mrf.mxu0
  %v427 = vadd.f32 0.0, %v426
  %v428 = vpop.f32.mrf.mxu0
  %v429 = vpop.f32.mrf.mxu0
  %v430 = vadd.f32 0.0, %v429
  %v431 = vpop.f32.mrf.mxu0
  %432 = vmatprep.mubr.bf16.mxu0 0
  %433 = vmatmul.mubr.bf16.gmra.mxu0 %v280
  %v434 = vpop.f32.mrf.mxu0
  %v435 = vadd.f32 0.0, %v434
  %v436 = vpop.f32.mrf.mxu0
  %v437 = vpop.f32.mrf.mxu0
  %v438 = vadd.f32 0.0, %v437
  %v439 = vpop.f32.mrf.mxu0
  %440 = vmatprep.mubr.bf16.mxu0 0
  %441 = vmatmul.mubr.bf16.gmra.mxu0 %v283
  %v442 = vpop.f32.mrf.mxu0
  %v443 = vadd.f32 0.0, %v442
  %v444 = vpop.f32.mrf.mxu0
  %v445 = vpop.f32.mrf.mxu0
  %v446 = vadd.f32 0.0, %v445
  %v447 = vpop.f32.mrf.mxu0
  %448 = vmatprep.mubr.bf16.mxu0 0
  %449 = vmatmul.mubr.bf16.gmra.mxu0 %v286
  %v450 = vpop.f32.mrf.mxu0
  %v451 = vadd.f32 0.0, %v450
  %v452 = vpop.f32.mrf.mxu0
  %v453 = vpop.f32.mrf.mxu0
  %v454 = vadd.f32 0.0, %v453
  %v455 = vpop.f32.mrf.mxu0
  %456 = vmatprep.mubr.bf16.mxu0 0
  %457 = vmatmul.mubr.bf16.gmra.mxu0 %v289
  %v458 = vpop.f32.mrf.mxu0
  %v459 = vadd.f32 0.0, %v458
  %v460 = vpop.f32.mrf.mxu0
  %v461 = vpop.f32.mrf.mxu0
  %v462 = vadd.f32 0.0, %v461
  %v463 = vpop.f32.mrf.mxu0
  %464 = vmatprep.mubr.bf16.mxu0 0
  %465 = vmatmul.mubr.bf16.gmra.mxu0 %v292
  %v466 = vpop.f32.mrf.mxu0
  %v467 = vadd.f32 0.0, %v466
  %v468 = vpop.f32.mrf.mxu0
  %v469 = vpop.f32.mrf.mxu0
  %v470 = vadd.f32 0.0, %v469
  %v471 = vpop.f32.mrf.mxu0
  %472 = vmatprep.mubr.bf16.mxu0 0
  %473 = vmatmul.mubr.bf16.gmra.mxu0 %v295
  %v474 = vpop.f32.mrf.mxu0
  %v475 = vadd.f32 0.0, %v474
  %v476 = vpop.f32.mrf.mxu0
  %v477 = vpop.f32.mrf.mxu0
  %v478 = vadd.f32 0.0, %v477
  %v479 = vpop.f32.mrf.mxu0
  %480 = vmatprep.mubr.bf16.mxu0 0
  %481 = vmatmul.mubr.bf16.gmra.mxu0 %v298
  %v482 = vpop.f32.mrf.mxu0
  %v483 = vadd.f32 0.0, %v482
  %v484 = vpop.f32.mrf.mxu0
  %v485 = vpop.f32.mrf.mxu0
  %v486 = vadd.f32 0.0, %v485
  %v487 = vpop.f32.mrf.mxu0
  %488 = vmatprep.mubr.bf16.mxu0 0
  %489 = vmatmul.mubr.bf16.gmra.mxu0 %v301
  %v490 = vpop.f32.mrf.mxu0
  %v491 = vadd.f32 0.0, %v490
  %v492 = vpop.f32.mrf.mxu0
  %v493 = vpop.f32.mrf.mxu0
  %v494 = vadd.f32 0.0, %v493
  %v495 = vpop.f32.mrf.mxu0
  %496 = vmatprep.mubr.bf16.mxu0 0
  %497 = vmatmul.mubr.bf16.gmra.mxu0 %v304
  %v498 = vpop.f32.mrf.mxu0
  %v499 = vadd.f32 0.0, %v498
  %v500 = vpop.f32.mrf.mxu0
  %v501 = vpop.f32.mrf.mxu0
  %v502 = vadd.f32 0.0, %v501
  %v503 = vpop.f32.mrf.mxu0
  %504 = vmatprep.mubr.bf16.mxu0 0
  %505 = vmatmul.mubr.bf16.gmra.mxu0 %v307
  %v506 = vpop.f32.mrf.mxu0
  %v507 = vadd.f32 0.0, %v506
  %v508 = vpop.f32.mrf.mxu0
  %v509 = vpop.f32.mrf.mxu0
  %v510 = vadd.f32 0.0, %v509
  %v511 = vpop.f32.mrf.mxu0
  %512 = vmatprep.mubr.bf16.mxu0 0
  %513 = vmatmul.mubr.bf16.gmra.mxu0 %v310
  %v514 = vpop.f32.mrf.mxu0
  %v515 = vadd.f32 0.0, %v514
  %v516 = vpop.f32.mrf.mxu0
  %v517 = vpop.f32.mrf.mxu0
  %v518 = vadd.f32 0.0, %v517
  %v519 = vpop.f32.mrf.mxu0
  %520 = vmatprep.mubr.bf16.mxu0 0
  %521 = vmatmul.mubr.bf16.gmra.mxu0 %v313
  %v522 = vpop.f32.mrf.mxu0
  %v523 = vadd.f32 0.0, %v522
  %v524 = vpop.f32.mrf.mxu0
  %v525 = vpop.f32.mrf.mxu0
  %v526 = vadd.f32 0.0, %v525
  %v527 = vpop.f32.mrf.mxu0
  %528 = vmatprep.mubr.bf16.mxu0 0
  %529 = vmatmul.mubr.bf16.gmra.mxu0 %v316
  %v530 = vpop.f32.mrf.mxu0
  %v531 = vadd.f32 0.0, %v530
  %v532 = vpop.f32.mrf.mxu0
  %v533 = vpop.f32.mrf.mxu0
  %v534 = vadd.f32 0.0, %v533
  %v535 = vpop.f32.mrf.mxu0
  %536 = vmatprep.mubr.bf16.mxu0 0
  %537 = vmatmul.mubr.bf16.gmra.mxu0 %v319
  %v538 = vpop.f32.mrf.mxu0
  %v539 = vadd.f32 0.0, %v538
  %v540 = vpop.f32.mrf.mxu0
  %v541 = vpop.f32.mrf.mxu0
  %v542 = vadd.f32 0.0, %v541
  %v543 = vpop.f32.mrf.mxu0
  %544 = vmatprep.mubr.bf16.mxu0 0
  %545 = vmatmul.mubr.bf16.gmra.mxu0 %v322
  %v546 = vpop.f32.mrf.mxu0
  %v547 = vadd.f32 0.0, %v546
  %v548 = vpop.f32.mrf.mxu0
  %v549 = vpop.f32.mrf.mxu0
  %v550 = vadd.f32 0.0, %v549
  %v551 = vpop.f32.mrf.mxu0
  %552 = vmatprep.mubr.bf16.mxu0 0
  %553 = vmatmul.mubr.bf16.gmra.mxu0 %v325
  %v554 = vpop.f32.mrf.mxu0
  %v555 = vadd.f32 0.0, %v554
  %v556 = vpop.f32.mrf.mxu0
  %v557 = vpop.f32.mrf.mxu0
  %v558 = vadd.f32 0.0, %v557
  %v559 = vpop.f32.mrf.mxu0
  %560 = vmatprep.mubr.bf16.mxu0 0
  %561 = vmatmul.mubr.bf16.gmra.mxu0 %v328
  %v562 = vpop.f32.mrf.mxu0
  %v563 = vadd.f32 0.0, %v562
  %v564 = vpop.f32.mrf.mxu0
  %v565 = vpop.f32.mrf.mxu0
  %v566 = vadd.f32 0.0, %v565
  %v567 = vpop.f32.mrf.mxu0
  %568 = vmatprep.mubr.bf16.mxu0 0
  %569 = vmatmul.mubr.bf16.gmra.mxu0 %v331
  %v570 = vpop.f32.mrf.mxu0
  %v571 = vadd.f32 0.0, %v570
  %v572 = vpop.f32.mrf.mxu0
  %v573 = vpop.f32.mrf.mxu0
  %v574 = vadd.f32 0.0, %v573
  %v575 = vpop.f32.mrf.mxu0
  %576 = vmatprep.mubr.bf16.mxu0 0
  %577 = vmatmul.mubr.bf16.gmra.mxu0 %v334
  %v578 = vpop.f32.mrf.mxu0
  %v579 = vadd.f32 0.0, %v578
  %v580 = vpop.f32.mrf.mxu0
  %v581 = vpop.f32.mrf.mxu0
  %v582 = vadd.f32 0.0, %v581
  %v583 = vpop.f32.mrf.mxu0
  %584 = vmatprep.mubr.bf16.mxu0 0
  %585 = vmatmul.mubr.bf16.gmra.mxu0 %v337
  %v586 = vpop.f32.mrf.mxu0
  %v587 = vadd.f32 0.0, %v586
  %v588 = vpop.f32.mrf.mxu0
  %v589 = vpop.f32.mrf.mxu0
  %v590 = vadd.f32 0.0, %v589
  %v591 = vpop.f32.mrf.mxu0
  %592 = vmatprep.mubr.bf16.mxu0 0
  %593 = vmatmul.mubr.bf16.gmra.mxu0 %v340
  %v594 = vpop.f32.mrf.mxu0
  %v595 = vadd.f32 0.0, %v594
  %v596 = vpop.f32.mrf.mxu0
  %v597 = vpop.f32.mrf.mxu0
  %v598 = vadd.f32 0.0, %v597
  %v599 = vpop.f32.mrf.mxu0
  %600 = vmatprep.mubr.bf16.mxu0 0
  %601 = vmatmul.mubr.bf16.gmra.mxu0 %v343
  %v602 = vpop.f32.mrf.mxu0
  %v603 = vadd.f32 0.0, %v602
  %v604 = vpop.f32.mrf.mxu0
  %v605 = vpop.f32.mrf.mxu0
  %v606 = vadd.f32 0.0, %v605
  %v607 = vpop.f32.mrf.mxu0
  %608 = vmatprep.mubr.bf16.mxu0 0
  %609 = vmatmul.mubr.bf16.gmra.mxu0 %v346
  %v610 = vpop.f32.mrf.mxu0
  %v611 = vadd.f32 0.0, %v610
  %v612 = vpop.f32.mrf.mxu0
  %v613 = vpop.f32.mrf.mxu0
  %v614 = vadd.f32 0.0, %v613
  %v615 = vpop.f32.mrf.mxu0
  %616 = vmatprep.mubr.bf16.mxu0 0
  %617 = vmatmul.mubr.bf16.gmra.mxu0 %v349
  %v618 = vpop.f32.mrf.mxu0
  %v619 = vadd.f32 0.0, %v618
  %v620 = vpop.f32.mrf.mxu0
  %v621 = vpop.f32.mrf.mxu0
  %v622 = vadd.f32 0.0, %v621
  %v623 = vpop.f32.mrf.mxu0
  %624 = vmatprep.mubr.bf16.mxu0 0
  %625 = vmatmul.mubr.bf16.gmra.mxu0 %v352
  %v626 = vpop.f32.mrf.mxu0
  %v627 = vadd.f32 0.0, %v626
  %v628 = vpop.f32.mrf.mxu0
  %v629 = vpop.f32.mrf.mxu0
  %v630 = vadd.f32 0.0, %v629
  %v631 = vpop.f32.mrf.mxu0
  %632 = vmatprep.mubr.bf16.mxu0 0
  %633 = vmatmul.mubr.bf16.gmra.mxu0 %v355
  %v634 = vpop.f32.mrf.mxu0
  %v635 = vadd.f32 0.0, %v634
  %v636 = vpop.f32.mrf.mxu0
  %v637 = vpop.f32.mrf.mxu0
  %v638 = vadd.f32 0.0, %v637
  %v639 = vpop.f32.mrf.mxu0
  %640 = vmatprep.mubr.bf16.mxu0 0
  %641 = vmatmul.mubr.bf16.gmra.mxu0 %v358
  %v642 = vpop.f32.mrf.mxu0
  %v643 = vadd.f32 0.0, %v642
  %v644 = vpop.f32.mrf.mxu0
  %v645 = vpop.f32.mrf.mxu0
  %v646 = vadd.f32 0.0, %v645
  %v647 = vpop.f32.mrf.mxu0
  %648 = vdwg.mxu0
  %v649 = vld [vmem:[%s2] sm:$0x1]
  %v651 = vlaneseq
  %v652 = vshrl.u32 %v651, 7
  %v653 = vsub.s32 0, %v652
  %v654 = vrot.slane %v649, %v653
  %v656 = vadd.f32 %v395, %v654
  %v657 = vadd.f32 %v398, %v654
  %v658 = vadd.f32 %v403, %v654
  %v659 = vadd.f32 %v406, %v654
  %v660 = vadd.f32 %v411, %v654
  %v661 = vadd.f32 %v414, %v654
  %v662 = vadd.f32 %v419, %v654
  %v663 = vadd.f32 %v422, %v654
  %v664 = vadd.f32 %v427, %v654
  %v665 = vadd.f32 %v430, %v654
  %v666 = vadd.f32 %v435, %v654
  %v667 = vadd.f32 %v438, %v654
  %v668 = vadd.f32 %v443, %v654
  %v669 = vadd.f32 %v446, %v654
  %v670 = vadd.f32 %v451, %v654
  %v671 = vadd.f32 %v454, %v654
  %v672 = vadd.f32 %v459, %v654
  %v673 = vadd.f32 %v462, %v654
  %v674 = vadd.f32 %v467, %v654
  %v675 = vadd.f32 %v470, %v654
  %v676 = vadd.f32 %v475, %v654
  %v677 = vadd.f32 %v478, %v654
  %v678 = vadd.f32 %v483, %v654
  %v679 = vadd.f32 %v486, %v654
  %v680 = vadd.f32 %v491, %v654
  %v681 = vadd.f32 %v494, %v654
  %v682 = vadd.f32 %v499, %v654
  %v683 = vadd.f32 %v502, %v654
  %v684 = vadd.f32 %v507, %v654
  %v685 = vadd.f32 %v510, %v654
  %v686 = vadd.f32 %v515, %v654
  %v687 = vadd.f32 %v518, %v654
  %v688 = vadd.f32 %v523, %v654
  %v689 = vadd.f32 %v526, %v654
  %v690 = vadd.f32 %v531, %v654
  %v691 = vadd.f32 %v534, %v654
  %v692 = vadd.f32 %v539, %v654
  %v693 = vadd.f32 %v542, %v654
  %v694 = vadd.f32 %v547, %v654
  %v695 = vadd.f32 %v550, %v654
  %v696 = vadd.f32 %v555, %v654
  %v697 = vadd.f32 %v558, %v654
  %v698 = vadd.f32 %v563, %v654
  %v699 = vadd.f32 %v566, %v654
  %v700 = vadd.f32 %v571, %v654
  %v701 = vadd.f32 %v574, %v654
  %v702 = vadd.f32 %v579, %v654
  %v703 = vadd.f32 %v582, %v654
  %v704 = vadd.f32 %v587, %v654
  %v705 = vadd.f32 %v590, %v654
  %v706 = vadd.f32 %v595, %v654
  %v707 = vadd.f32 %v598, %v654
  %v708 = vadd.f32 %v603, %v654
  %v709 = vadd.f32 %v606, %v654
  %v710 = vadd.f32 %v611, %v654
  %v711 = vadd.f32 %v614, %v654
  %v712 = vadd.f32 %v619, %v654
  %v713 = vadd.f32 %v622, %v654
  %v714 = vadd.f32 %v627, %v654
  %v715 = vadd.f32 %v630, %v654
  %v716 = vadd.f32 %v635, %v654
  %v717 = vadd.f32 %v638, %v654
  %v718 = vadd.f32 %v643, %v654
  %v719 = vadd.f32 %v646, %v654
  %v720 = vpack.c.bf16 %v657, %v656
  %v721 = vpack.c.bf16 %v659, %v658
  %v722 = vpack.c.bf16 %v661, %v660
  %v723 = vpack.c.bf16 %v663, %v662
  %v724 = vpack.c.bf16 %v665, %v664
  %v725 = vpack.c.bf16 %v667, %v666
  %v726 = vpack.c.bf16 %v669, %v668
  %v727 = vpack.c.bf16 %v671, %v670
  %v728 = vpack.c.bf16 %v673, %v672
  %v729 = vpack.c.bf16 %v675, %v674
  %v730 = vpack.c.bf16 %v677, %v676
  %v731 = vpack.c.bf16 %v679, %v678
  %v732 = vpack.c.bf16 %v681, %v680
  %v733 = vpack.c.bf16 %v683, %v682
  %v734 = vpack.c.bf16 %v685, %v684
  %v735 = vpack.c.bf16 %v687, %v686
  %v736 = vpack.c.bf16 %v689, %v688
  %v737 = vpack.c.bf16 %v691, %v690
  %v738 = vpack.c.bf16 %v693, %v692
  %v739 = vpack.c.bf16 %v695, %v694
  %v740 = vpack.c.bf16 %v697, %v696
  %v741 = vpack.c.bf16 %v699, %v698
  %v742 = vpack.c.bf16 %v701, %v700
  %v743 = vpack.c.bf16 %v703, %v702
  %v744 = vpack.c.bf16 %v705, %v704
  %v745 = vpack.c.bf16 %v707, %v706
  %v746 = vpack.c.bf16 %v709, %v708
  %v747 = vpack.c.bf16 %v711, %v710
  %v748 = vpack.c.bf16 %v713, %v712
  %v749 = vpack.c.bf16 %v715, %v714
  %v750 = vpack.c.bf16 %v717, %v716
  %v751 = vpack.c.bf16 %v719, %v718
  %v784 = vunpack.c.l.b16 %v720
  %v785 = vunpack.c.h.b16 %v720
  %v786 = vunpack.c.l.b16 %v721
  %v787 = vunpack.c.h.b16 %v721
  %v788 = vunpack.c.l.b16 %v722
  %v789 = vunpack.c.h.b16 %v722
  %v790 = vunpack.c.l.b16 %v723
  %v791 = vunpack.c.h.b16 %v723
  %v792 = vunpack.c.l.b16 %v724
  %v793 = vunpack.c.h.b16 %v724
  %v794 = vunpack.c.l.b16 %v725
  %v795 = vunpack.c.h.b16 %v725
  %v796 = vunpack.c.l.b16 %v726
  %v797 = vunpack.c.h.b16 %v726
  %v798 = vunpack.c.l.b16 %v727
  %v799 = vunpack.c.h.b16 %v727
  %v800 = vunpack.c.l.b16 %v728
  %v801 = vunpack.c.h.b16 %v728
  %v802 = vunpack.c.l.b16 %v729
  %v803 = vunpack.c.h.b16 %v729
  %v804 = vunpack.c.l.b16 %v730
  %v805 = vunpack.c.h.b16 %v730
  %v806 = vunpack.c.l.b16 %v731
  %v807 = vunpack.c.h.b16 %v731
  %v808 = vunpack.c.l.b16 %v732
  %v809 = vunpack.c.h.b16 %v732
  %v810 = vunpack.c.l.b16 %v733
  %v811 = vunpack.c.h.b16 %v733
  %v812 = vunpack.c.l.b16 %v734
  %v813 = vunpack.c.h.b16 %v734
  %v814 = vunpack.c.l.b16 %v735
  %v815 = vunpack.c.h.b16 %v735
  %v816 = vunpack.c.l.b16 %v736
  %v817 = vunpack.c.h.b16 %v736
  %v818 = vunpack.c.l.b16 %v737
  %v819 = vunpack.c.h.b16 %v737
  %v820 = vunpack.c.l.b16 %v738
  %v821 = vunpack.c.h.b16 %v738
  %v822 = vunpack.c.l.b16 %v739
  %v823 = vunpack.c.h.b16 %v739
  %v824 = vunpack.c.l.b16 %v740
  %v825 = vunpack.c.h.b16 %v740
  %v826 = vunpack.c.l.b16 %v741
  %v827 = vunpack.c.h.b16 %v741
  %v828 = vunpack.c.l.b16 %v742
  %v829 = vunpack.c.h.b16 %v742
  %v830 = vunpack.c.l.b16 %v743
  %v831 = vunpack.c.h.b16 %v743
  %v832 = vunpack.c.l.b16 %v744
  %v833 = vunpack.c.h.b16 %v744
  %v834 = vunpack.c.l.b16 %v745
  %v835 = vunpack.c.h.b16 %v745
  %v836 = vunpack.c.l.b16 %v746
  %v837 = vunpack.c.h.b16 %v746
  %v838 = vunpack.c.l.b16 %v747
  %v839 = vunpack.c.h.b16 %v747
  %v840 = vunpack.c.l.b16 %v748
  %v841 = vunpack.c.h.b16 %v748
  %v842 = vunpack.c.l.b16 %v749
  %v843 = vunpack.c.h.b16 %v749
  %v844 = vunpack.c.l.b16 %v750
  %v845 = vunpack.c.h.b16 %v750
  %v846 = vunpack.c.l.b16 %v751
  %v847 = vunpack.c.h.b16 %v751
  %v848 = vpack.c.b16 %v784, %v784
  %v849 = vpack.c.b16 %v785, %v785
  %v850 = vpack.c.b16 %v786, %v786
  %v851 = vpack.c.b16 %v787, %v787
  %v852 = vpack.c.b16 %v788, %v788
  %v853 = vpack.c.b16 %v789, %v789
  %v854 = vpack.c.b16 %v790, %v790
  %v855 = vpack.c.b16 %v791, %v791
  %v856 = vpack.c.b16 %v792, %v792
  %v857 = vpack.c.b16 %v793, %v793
  %v858 = vpack.c.b16 %v794, %v794
  %v859 = vpack.c.b16 %v795, %v795
  %v860 = vpack.c.b16 %v796, %v796
  %v861 = vpack.c.b16 %v797, %v797
  %v862 = vpack.c.b16 %v798, %v798
  %v863 = vpack.c.b16 %v799, %v799
  %v864 = vpack.c.b16 %v800, %v800
  %v865 = vpack.c.b16 %v801, %v801
  %v866 = vpack.c.b16 %v802, %v802
  %v867 = vpack.c.b16 %v803, %v803
  %v868 = vpack.c.b16 %v804, %v804
  %v869 = vpack.c.b16 %v805, %v805
  %v870 = vpack.c.b16 %v806, %v806
  %v871 = vpack.c.b16 %v807, %v807
  %v872 = vpack.c.b16 %v808, %v808
  %v873 = vpack.c.b16 %v809, %v809
  %v874 = vpack.c.b16 %v810, %v810
  %v875 = vpack.c.b16 %v811, %v811
  %v876 = vpack.c.b16 %v812, %v812
  %v877 = vpack.c.b16 %v813, %v813
  %v878 = vpack.c.b16 %v814, %v814
  %v879 = vpack.c.b16 %v815, %v815
  %v880 = vpack.c.b16 %v816, %v816
  %v881 = vpack.c.b16 %v817, %v817
  %v882 = vpack.c.b16 %v818, %v818
  %v883 = vpack.c.b16 %v819, %v819
  %v884 = vpack.c.b16 %v820, %v820
  %v885 = vpack.c.b16 %v821, %v821
  %v886 = vpack.c.b16 %v822, %v822
  %v887 = vpack.c.b16 %v823, %v823
  %v888 = vpack.c.b16 %v824, %v824
  %v889 = vpack.c.b16 %v825, %v825
  %v890 = vpack.c.b16 %v826, %v826
  %v891 = vpack.c.b16 %v827, %v827
  %v892 = vpack.c.b16 %v828, %v828
  %v893 = vpack.c.b16 %v829, %v829
  %v894 = vpack.c.b16 %v830, %v830
  %v895 = vpack.c.b16 %v831, %v831
  %v896 = vpack.c.b16 %v832, %v832
  %v897 = vpack.c.b16 %v833, %v833
  %v898 = vpack.c.b16 %v834, %v834
  %v899 = vpack.c.b16 %v835, %v835
  %v900 = vpack.c.b16 %v836, %v836
  %v901 = vpack.c.b16 %v837, %v837
  %v902 = vpack.c.b16 %v838, %v838
  %v903 = vpack.c.b16 %v839, %v839
  %v904 = vpack.c.b16 %v840, %v840
  %v905 = vpack.c.b16 %v841, %v841
  %v906 = vpack.c.b16 %v842, %v842
  %v907 = vpack.c.b16 %v843, %v843
  %v908 = vpack.c.b16 %v844, %v844
  %v909 = vpack.c.b16 %v845, %v845
  %v910 = vpack.c.b16 %v846, %v846
  %v911 = vpack.c.b16 %v847, %v847
  %vm976 = vcmask 60416
  %977 = vst.msk [vmem:[%s3] sm:$0xf] %vm976, %v848
  %978 = vst.msk [vmem:[%s3 + $0x4] sm:$0xf] %vm976, %v849
  %979 = vst.msk [vmem:[%s3 + $0x8] sm:$0xf] %vm976, %v850
  %980 = vst.msk [vmem:[%s3 + $0xc] sm:$0xf] %vm976, %v851
  %981 = vst.msk [vmem:[%s3 + $0x10] sm:$0xf] %vm976, %v852
  %982 = vst.msk [vmem:[%s3 + $0x14] sm:$0xf] %vm976, %v853
  %983 = vst.msk [vmem:[%s3 + $0x18] sm:$0xf] %vm976, %v854
  %984 = vst.msk [vmem:[%s3 + $0x1c] sm:$0xf] %vm976, %v855
  %985 = vst.msk [vmem:[%s3 + $0x20] sm:$0xf] %vm976, %v856
  %986 = vst.msk [vmem:[%s3 + $0x24] sm:$0xf] %vm976, %v857
  %987 = vst.msk [vmem:[%s3 + $0x28] sm:$0xf] %vm976, %v858
  %988 = vst.msk [vmem:[%s3 + $0x2c] sm:$0xf] %vm976, %v859
  %989 = vst.msk [vmem:[%s3 + $0x30] sm:$0xf] %vm976, %v860
  %990 = vst.msk [vmem:[%s3 + $0x34] sm:$0xf] %vm976, %v861
  %991 = vst.msk [vmem:[%s3 + $0x38] sm:$0xf] %vm976, %v862
  %992 = vst.msk [vmem:[%s3 + $0x3c] sm:$0xf] %vm976, %v863
  %993 = vst.msk [vmem:[%s3 + $0x40] sm:$0xf] %vm976, %v864
  %994 = vst.msk [vmem:[%s3 + $0x44] sm:$0xf] %vm976, %v865
  %995 = vst.msk [vmem:[%s3 + $0x48] sm:$0xf] %vm976, %v866
  %996 = vst.msk [vmem:[%s3 + $0x4c] sm:$0xf] %vm976, %v867
  %997 = vst.msk [vmem:[%s3 + $0x50] sm:$0xf] %vm976, %v868
  %998 = vst.msk [vmem:[%s3 + $0x54] sm:$0xf] %vm976, %v869
  %999 = vst.msk [vmem:[%s3 + $0x58] sm:$0xf] %vm976, %v870
  %1000 = vst.msk [vmem:[%s3 + $0x5c] sm:$0xf] %vm976, %v871
  %1001 = vst.msk [vmem:[%s3 + $0x60] sm:$0xf] %vm976, %v872
  %1002 = vst.msk [vmem:[%s3 + $0x64] sm:$0xf] %vm976, %v873
  %1003 = vst.msk [vmem:[%s3 + $0x68] sm:$0xf] %vm976, %v874
  %1004 = vst.msk [vmem:[%s3 + $0x6c] sm:$0xf] %vm976, %v875
  %1005 = vst.msk [vmem:[%s3 + $0x70] sm:$0xf] %vm976, %v876
  %1006 = vst.msk [vmem:[%s3 + $0x74] sm:$0xf] %vm976, %v877
  %1007 = vst.msk [vmem:[%s3 + $0x78] sm:$0xf] %vm976, %v878
  %1008 = vst.msk [vmem:[%s3 + $0x7c] sm:$0xf] %vm976, %v879
  %1009 = vst.msk [vmem:[%s3 + $0x80] sm:$0xf] %vm976, %v880
  %1010 = vst.msk [vmem:[%s3 + $0x84] sm:$0xf] %vm976, %v881
  %1011 = vst.msk [vmem:[%s3 + $0x88] sm:$0xf] %vm976, %v882
  %1012 = vst.msk [vmem:[%s3 + $0x8c] sm:$0xf] %vm976, %v883
  %1013 = vst.msk [vmem:[%s3 + $0x90] sm:$0xf] %vm976, %v884
  %1014 = vst.msk [vmem:[%s3 + $0x94] sm:$0xf] %vm976, %v885
  %1015 = vst.msk [vmem:[%s3 + $0x98] sm:$0xf] %vm976, %v886
  %1016 = vst.msk [vmem:[%s3 + $0x9c] sm:$0xf] %vm976, %v887
  %1017 = vst.msk [vmem:[%s3 + $0xa0] sm:$0xf] %vm976, %v888
  %1018 = vst.msk [vmem:[%s3 + $0xa4] sm:$0xf] %vm976, %v889
  %1019 = vst.msk [vmem:[%s3 + $0xa8] sm:$0xf] %vm976, %v890
  %1020 = vst.msk [vmem:[%s3 + $0xac] sm:$0xf] %vm976, %v891
  %1021 = vst.msk [vmem:[%s3 + $0xb0] sm:$0xf] %vm976, %v892
  %1022 = vst.msk [vmem:[%s3 + $0xb4] sm:$0xf] %vm976, %v893
  %1023 = vst.msk [vmem:[%s3 + $0xb8] sm:$0xf] %vm976, %v894
  %1024 = vst.msk [vmem:[%s3 + $0xbc] sm:$0xf] %vm976, %v895
  %1025 = vst.msk [vmem:[%s3 + $0xc0] sm:$0xf] %vm976, %v896
  %1026 = vst.msk [vmem:[%s3 + $0xc4] sm:$0xf] %vm976, %v897
  %1027 = vst.msk [vmem:[%s3 + $0xc8] sm:$0xf] %vm976, %v898
  %1028 = vst.msk [vmem:[%s3 + $0xcc] sm:$0xf] %vm976, %v899
  %1029 = vst.msk [vmem:[%s3 + $0xd0] sm:$0xf] %vm976, %v900
  %1030 = vst.msk [vmem:[%s3 + $0xd4] sm:$0xf] %vm976, %v901
  %1031 = vst.msk [vmem:[%s3 + $0xd8] sm:$0xf] %vm976, %v902
  %1032 = vst.msk [vmem:[%s3 + $0xdc] sm:$0xf] %vm976, %v903
  %1033 = vst.msk [vmem:[%s3 + $0xe0] sm:$0xf] %vm976, %v904
  %1034 = vst.msk [vmem:[%s3 + $0xe4] sm:$0xf] %vm976, %v905
  %1035 = vst.msk [vmem:[%s3 + $0xe8] sm:$0xf] %vm976, %v906
  %1036 = vst.msk [vmem:[%s3 + $0xec] sm:$0xf] %vm976, %v907
  %1037 = vst.msk [vmem:[%s3 + $0xf0] sm:$0xf] %vm976, %v908
  %1038 = vst.msk [vmem:[%s3 + $0xf4] sm:$0xf] %vm976, %v909
  %1039 = vst.msk [vmem:[%s3 + $0xf8] sm:$0xf] %vm976, %v910
  %1040 = vst.msk [vmem:[%s3 + $0xfc] sm:$0xf] %vm976, %v911
  // Predicated region
  $region14: #{_lambda_.5} parent=0 // pred_check
    _
  $region15: #{_lambda_.5} parent=0 // pred_check_branch
    %1042 = sbr.rel (0) target = $region17
  $region16: #{_lambda_.5} parent=0 // pred_region
    _
  $region17: #{_lambda_.5} parent=0 // pred_fallthru
    _
  // Predicated region
  $region18: #{_lambda_.5} parent=0 // pred_check
    _
  $region19: #{_lambda_.5} parent=0 // pred_check_branch
    %1044 = sbr.rel (0) target = $region21
  $region20: #{_lambda_.5} parent=0 // pred_region
    _
  $region21: #{_lambda_.5} parent=0 // pred_fallthru
    _

// kernel: _lambda_.6
$region0: #{_lambda_.6}
  #allocation0 [shape = 'u32[]', space=smem, size = 0x4, offset = 0x4, fixed_abs, tag = 'smem constant byte address 0x4 - core index']
  #allocation1 [shape = 'u32[144,128]{1,0:T(1,128)}', space=vmem, size = 0x12000, scoped, tag = 'internal scratch']
  %s0 = inlined_call_operand.vmem [shape: bf16[128,80], index: 0, kind: input, shape index: {}]
  %s1 = inlined_call_operand.vmem [shape: bf16[80,128], index: 1, kind: input, shape index: {}]
  %s2 = inlined_call_operand.vmem [shape: f32[1,8], index: 2, kind: input, shape index: {}]
  %s3 = inlined_call_operand.vmem [shape: f32[1,8], index: 3, kind: input, shape index: {}]
  %s4 = inlined_call_operand.vmem [shape: bf16[128,8], index: 4, kind: output, shape index: {}]
  %s5 = sld [smem:[#allocation0]]
  $region26: #{_lambda_.6} parent=0
    _
  %s7 = ssub.s32 1, %s5
  %s8 = scalar_select 0, %s7, %s5
  // Predicated region
  $region2: #{_lambda_.6} parent=0 // pred_check
    _
  $region3: #{_lambda_.6} parent=0 // pred_check_branch
    %10 = sbr.rel (0) target = $region5
  $region4: #{_lambda_.6} parent=0 // pred_region
    _
  $region5: #{_lambda_.6} parent=0 // pred_fallthru
    _
  // Predicated region
  $region6: #{_lambda_.6} parent=0 // pred_check
    _
  $region7: #{_lambda_.6} parent=0 // pred_check_branch
    %12 = sbr.rel (0) target = $region9
  $region8: #{_lambda_.6} parent=0 // pred_region
    _
  $region9: #{_lambda_.6} parent=0 // pred_fallthru
    _
  // Predicated region
  $region10: #{_lambda_.6} parent=0 // pred_check
    _
  $region11: #{_lambda_.6} parent=0 // pred_check_branch
    %14 = sbr.rel (0) target = $region13
  $region12: #{_lambda_.6} parent=0 // pred_region
    _
  $region13: #{_lambda_.6} parent=0 // pred_fallthru
    _
  // Predicated region
  $region14: #{_lambda_.6} parent=0 // pred_check
    _
  $region15: #{_lambda_.6} parent=0 // pred_check_branch
    %16 = sbr.rel (0) target = $region17
  $region16: #{_lambda_.6} parent=0 // pred_region
    _
  $region17: #{_lambda_.6} parent=0 // pred_fallthru
    _
  %v18 = vld [vmem:[%s0] sm:$0xf]
  %v19 = vld [vmem:[%s0 + $0x4] sm:$0xf]
  %v20 = vld [vmem:[%s0 + $0x8] sm:$0xf]
  %v21 = vld [vmem:[%s0 + $0xc] sm:$0xf]
  %v22 = vld [vmem:[%s0 + $0x10] sm:$0xf]
  %v23 = vld [vmem:[%s0 + $0x14] sm:$0xf]
  %v24 = vld [vmem:[%s0 + $0x18] sm:$0xf]
  %v25 = vld [vmem:[%s0 + $0x1c] sm:$0xf]
  %v26 = vld [vmem:[%s0 + $0x20] sm:$0xf]
  %v27 = vld [vmem:[%s0 + $0x24] sm:$0xf]
  %v28 = vld [vmem:[%s0 + $0x28] sm:$0xf]
  %v29 = vld [vmem:[%s0 + $0x2c] sm:$0xf]
  %v30 = vld [vmem:[%s0 + $0x30] sm:$0xf]
  %v31 = vld [vmem:[%s0 + $0x34] sm:$0xf]
  %v32 = vld [vmem:[%s0 + $0x38] sm:$0xf]
  %v33 = vld [vmem:[%s0 + $0x3c] sm:$0xf]
  %v34 = vld [vmem:[%s1] sm:$0xf]
  %v35 = vld [vmem:[%s1 + $0x4] sm:$0xf]
  %v36 = vld [vmem:[%s1 + $0x8] sm:$0xf]
  %v37 = vld [vmem:[%s1 + $0xc] sm:$0xf]
  %v38 = vld [vmem:[%s1 + $0x10] sm:$0xf]
  %v39 = vld [vmem:[%s1 + $0x14] sm:$0xf]
  %v40 = vld [vmem:[%s1 + $0x18] sm:$0xf]
  %v41 = vld [vmem:[%s1 + $0x1c] sm:$0xf]
  %v42 = vld [vmem:[%s1 + $0x20] sm:$0xf]
  %v43 = vld [vmem:[%s1 + $0x24] sm:$0xf]
  %v60 = vunpack.c.l.b16 %v18
  %v61 = vunpack.c.l.b16 %v19
  %v62 = vunpack.c.l.b16 %v20
  %v63 = vunpack.c.l.b16 %v21
  %v64 = vunpack.c.l.b16 %v22
  %v65 = vunpack.c.l.b16 %v23
  %v66 = vunpack.c.l.b16 %v24
  %v67 = vunpack.c.l.b16 %v25
  %v68 = vunpack.c.l.b16 %v26
  %v69 = vunpack.c.l.b16 %v27
  %v70 = vunpack.c.l.b16 %v28
  %v71 = vunpack.c.l.b16 %v29
  %v72 = vunpack.c.l.b16 %v30
  %v73 = vunpack.c.l.b16 %v31
  %v74 = vunpack.c.l.b16 %v32
  %v75 = vunpack.c.l.b16 %v33
  %v76 = vpack.c.b16 %v61, %v60
  %v77 = vpack.c.b16 %v63, %v62
  %v78 = vpack.c.b16 %v65, %v64
  %v79 = vpack.c.b16 %v67, %v66
  %v80 = vpack.c.b16 %v69, %v68
  %v81 = vpack.c.b16 %v71, %v70
  %v82 = vpack.c.b16 %v73, %v72
  %v83 = vpack.c.b16 %v75, %v74
  %v94 = vunpack.c.l.b16 %v34
  %v95 = vunpack.c.l.b16 %v35
  %v96 = vunpack.c.l.b16 %v36
  %v97 = vunpack.c.l.b16 %v37
  %v98 = vunpack.c.l.b16 %v38
  %v99 = vunpack.c.l.b16 %v39
  %v100 = vunpack.c.l.b16 %v40
  %v101 = vunpack.c.l.b16 %v41
  %v102 = vunpack.c.l.b16 %v42
  %v103 = vunpack.c.l.b16 %v43
  %v104 = vpack.c.b16 %v95, %v94
  %v105 = vpack.c.b16 %v97, %v96
  %v106 = vpack.c.b16 %v99, %v98
  %v107 = vpack.c.b16 %v101, %v100
  %v108 = vpack.c.b16 %v103, %v102
  %vm114 = vcmask 654336
  %v116 = vsel %vm114, %v76, 0
  %v119 = vsel %vm114, %v77, 0
  %v122 = vsel %vm114, %v78, 0
  %v125 = vsel %vm114, %v79, 0
  %v128 = vsel %vm114, %v80, 0
  %v131 = vsel %vm114, %v81, 0
  %v134 = vsel %vm114, %v82, 0
  %v137 = vsel %vm114, %v83, 0
  %139 = vmatprep.subr.bf16.mxu0 0
  %140 = vmatpush1.bf16.msra.mxu0 0
  %141 = vmatprep.subr.bf16.mxu0 0
  %142 = vmatpush1.bf16.msra.mxu0 0
  %143 = vmatprep.subr.bf16.mxu0 0
  %144 = vmatpush1.bf16.msra.mxu0 0
  %145 = vmatprep.subr.bf16.mxu0 0
  %146 = vmatpush1.bf16.msra.mxu0 %v108
  %147 = vmatprep.subr.bf16.mxu0 0
  %148 = vmatpush1.bf16.msra.mxu0 %v107
  %149 = vmatprep.subr.bf16.mxu0 0
  %150 = vmatpush1.bf16.msra.mxu0 %v106
  %151 = vmatprep.subr.bf16.mxu0 0
  %152 = vmatpush1.bf16.msra.mxu0 %v105
  %153 = vmatprep.subr.bf16.mxu0 0
  %154 = vmatpush1.bf16.msra.mxu0 %v104
  %155 = vmatprep.subr.bf16.mxu0 0
  %156 = vmatpush2.bf16.msra.mxu0 0
  %157 = vmatprep.subr.bf16.mxu0 0
  %158 = vmatpush2.bf16.msra.mxu0 0
  %159 = vmatprep.subr.bf16.mxu0 0
  %160 = vmatpush2.bf16.msra.mxu0 0
  %161 = vmatprep.subr.bf16.mxu0 0
  %162 = vmatpush2.bf16.msra.mxu0 0
  %163 = vmatprep.subr.bf16.mxu0 0
  %164 = vmatpush2.bf16.msra.mxu0 0
  %165 = vmatprep.subr.bf16.mxu0 0
  %166 = vmatpush2.bf16.msra.mxu0 0
  %167 = vmatprep.subr.bf16.mxu0 0
  %168 = vmatpush2.bf16.msra.mxu0 0
  %169 = vmatprep.subr.bf16.mxu0 0
  %170 = vmatpush2.bf16.msra.mxu0 0
  %171 = vmatprep.mubr.bf16.mxu0 0
  %172 = vmatmul.mubr.bf16.gmra.mxu0 %v116
  %v173 = vpop.f32.mrf.mxu0
  %v174 = vadd.f32 0.0, %v173
  %v175 = vpop.f32.mrf.mxu0
  %v176 = vpop.f32.mrf.mxu0
  %v177 = vadd.f32 0.0, %v176
  %v178 = vpop.f32.mrf.mxu0
  %179 = vmatprep.mubr.bf16.mxu0 0
  %180 = vmatmul.mubr.bf16.gmra.mxu0 %v119
  %v181 = vpop.f32.mrf.mxu0
  %v182 = vadd.f32 0.0, %v181
  %v183 = vpop.f32.mrf.mxu0
  %v184 = vpop.f32.mrf.mxu0
  %v185 = vadd.f32 0.0, %v184
  %v186 = vpop.f32.mrf.mxu0
  %187 = vmatprep.mubr.bf16.mxu0 0
  %188 = vmatmul.mubr.bf16.gmra.mxu0 %v122
  %v189 = vpop.f32.mrf.mxu0
  %v190 = vadd.f32 0.0, %v189
  %v191 = vpop.f32.mrf.mxu0
  %v192 = vpop.f32.mrf.mxu0
  %v193 = vadd.f32 0.0, %v192
  %v194 = vpop.f32.mrf.mxu0
  %195 = vmatprep.mubr.bf16.mxu0 0
  %196 = vmatmul.mubr.bf16.gmra.mxu0 %v125
  %v197 = vpop.f32.mrf.mxu0
  %v198 = vadd.f32 0.0, %v197
  %v199 = vpop.f32.mrf.mxu0
  %v200 = vpop.f32.mrf.mxu0
  %v201 = vadd.f32 0.0, %v200
  %v202 = vpop.f32.mrf.mxu0
  %203 = vmatprep.mubr.bf16.mxu0 0
  %204 = vmatmul.mubr.bf16.gmra.mxu0 %v128
  %v205 = vpop.f32.mrf.mxu0
  %v206 = vadd.f32 0.0, %v205
  %v207 = vpop.f32.mrf.mxu0
  %v208 = vpop.f32.mrf.mxu0
  %v209 = vadd.f32 0.0, %v208
  %v210 = vpop.f32.mrf.mxu0
  %211 = vmatprep.mubr.bf16.mxu0 0
  %212 = vmatmul.mubr.bf16.gmra.mxu0 %v131
  %v213 = vpop.f32.mrf.mxu0
  %v214 = vadd.f32 0.0, %v213
  %v215 = vpop.f32.mrf.mxu0
  %v216 = vpop.f32.mrf.mxu0
  %v217 = vadd.f32 0.0, %v216
  %v218 = vpop.f32.mrf.mxu0
  %219 = vmatprep.mubr.bf16.mxu0 0
  %220 = vmatmul.mubr.bf16.gmra.mxu0 %v134
  %v221 = vpop.f32.mrf.mxu0
  %v222 = vadd.f32 0.0, %v221
  %v223 = vpop.f32.mrf.mxu0
  %v224 = vpop.f32.mrf.mxu0
  %v225 = vadd.f32 0.0, %v224
  %v226 = vpop.f32.mrf.mxu0
  %227 = vmatprep.mubr.bf16.mxu0 0
  %228 = vmatmul.mubr.bf16.gmra.mxu0 %v137
  %v229 = vpop.f32.mrf.mxu0
  %v230 = vadd.f32 0.0, %v229
  %v231 = vpop.f32.mrf.mxu0
  %v232 = vpop.f32.mrf.mxu0
  %v233 = vadd.f32 0.0, %v232
  %v234 = vpop.f32.mrf.mxu0
  %235 = vdwg.mxu0
  %vm236 = vcmask 64512
  %v237 = vsel %vm236, %v174, 0.0
  %v238 = vsel %vm236, %v177, 0.0
  %v239 = vadd.f32 %v237, %v238
  %v240 = vsel %vm236, %v182, 0.0
  %v241 = vadd.f32 %v239, %v240
  %v242 = vsel %vm236, %v185, 0.0
  %v243 = vadd.f32 %v241, %v242
  %v244 = vsel %vm236, %v190, 0.0
  %v245 = vadd.f32 %v243, %v244
  %v246 = vsel %vm236, %v193, 0.0
  %v247 = vadd.f32 %v245, %v246
  %v248 = vsel %vm236, %v198, 0.0
  %v249 = vadd.f32 %v247, %v248
  %v250 = vsel %vm236, %v201, 0.0
  %v251 = vadd.f32 %v249, %v250
  %v252 = vsel %vm236, %v206, 0.0
  %v253 = vadd.f32 %v251, %v252
  %v254 = vsel %vm236, %v209, 0.0
  %v255 = vadd.f32 %v253, %v254
  %v256 = vsel %vm236, %v214, 0.0
  %v257 = vadd.f32 %v255, %v256
  %v258 = vsel %vm236, %v217, 0.0
  %v259 = vadd.f32 %v257, %v258
  %v260 = vsel %vm236, %v222, 0.0
  %v261 = vadd.f32 %v259, %v260
  %v262 = vsel %vm236, %v225, 0.0
  %v263 = vadd.f32 %v261, %v262
  %v264 = vsel %vm236, %v230, 0.0
  %v265 = vadd.f32 %v263, %v264
  %v266 = vsel %vm236, %v233, 0.0
  %v267 = vadd.f32 %v265, %v266
  %v268 = vrot.slane %v267, 4
  %v269 = vadd.f32 %v267, %v268
  %v270 = vrot.slane %v269, 2
  %v271 = vadd.f32 %v269, %v270
  %v272 = vrot.slane %v271, 1
  %v273 = vadd.f32 %v271, %v272
  %v274 = vrcp.pop 128.0
  %v275 = vmul.f32 %v273, %v274
  %v276 = vsub.f32 %v174, %v275
  %v277 = vsub.f32 %v177, %v275
  %v278 = vsub.f32 %v182, %v275
  %v279 = vsub.f32 %v185, %v275
  %v280 = vsub.f32 %v190, %v275
  %v281 = vsub.f32 %v193, %v275
  %v282 = vsub.f32 %v198, %v275
  %v283 = vsub.f32 %v201, %v275
  %v284 = vsub.f32 %v206, %v275
  %v285 = vsub.f32 %v209, %v275
  %v286 = vsub.f32 %v214, %v275
  %v287 = vsub.f32 %v217, %v275
  %v288 = vsub.f32 %v222, %v275
  %v289 = vsub.f32 %v225, %v275
  %v290 = vsub.f32 %v230, %v275
  %v291 = vsub.f32 %v233, %v275
  %v292 = vmul.f32 %v276, %v276
  %v293 = vmul.f32 %v277, %v277
  %v294 = vmul.f32 %v278, %v278
  %v295 = vmul.f32 %v279, %v279
  %v296 = vmul.f32 %v280, %v280
  %v297 = vmul.f32 %v281, %v281
  %v298 = vmul.f32 %v282, %v282
  %v299 = vmul.f32 %v283, %v283
  %v300 = vmul.f32 %v284, %v284
  %v301 = vmul.f32 %v285, %v285
  %v302 = vmul.f32 %v286, %v286
  %v303 = vmul.f32 %v287, %v287
  %v304 = vmul.f32 %v288, %v288
  %v305 = vmul.f32 %v289, %v289
  %v306 = vmul.f32 %v290, %v290
  %v307 = vmul.f32 %v291, %v291
  %v308 = vsel %vm236, %v292, 0.0
  %v309 = vsel %vm236, %v293, 0.0
  %v310 = vadd.f32 %v308, %v309
  %v311 = vsel %vm236, %v294, 0.0
  %v312 = vadd.f32 %v310, %v311
  %v313 = vsel %vm236, %v295, 0.0
  %v314 = vadd.f32 %v312, %v313
  %v315 = vsel %vm236, %v296, 0.0
  %v316 = vadd.f32 %v314, %v315
  %v317 = vsel %vm236, %v297, 0.0
  %v318 = vadd.f32 %v316, %v317
  %v319 = vsel %vm236, %v298, 0.0
  %v320 = vadd.f32 %v318, %v319
  %v321 = vsel %vm236, %v299, 0.0
  %v322 = vadd.f32 %v320, %v321
  %v323 = vsel %vm236, %v300, 0.0
  %v324 = vadd.f32 %v322, %v323
  %v325 = vsel %vm236, %v301, 0.0
  %v326 = vadd.f32 %v324, %v325
  %v327 = vsel %vm236, %v302, 0.0
  %v328 = vadd.f32 %v326, %v327
  %v329 = vsel %vm236, %v303, 0.0
  %v330 = vadd.f32 %v328, %v329
  %v331 = vsel %vm236, %v304, 0.0
  %v332 = vadd.f32 %v330, %v331
  %v333 = vsel %vm236, %v305, 0.0
  %v334 = vadd.f32 %v332, %v333
  %v335 = vsel %vm236, %v306, 0.0
  %v336 = vadd.f32 %v334, %v335
  %v337 = vsel %vm236, %v307, 0.0
  %v338 = vadd.f32 %v336, %v337
  %v339 = vrot.slane %v338, 4
  %v340 = vadd.f32 %v338, %v339
  %v341 = vrot.slane %v340, 2
  %v342 = vadd.f32 %v340, %v341
  %v343 = vrot.slane %v342, 1
  %v344 = vadd.f32 %v342, %v343
  %v345 = vmul.f32 %v344, %v274
  %v346 = vld [vmem:[%s2] sm:$0x1]
  %v347 = vadd.f32 %v345, 1e-05
  %v348 = vrsqrt.pop %v347
  %v349 = vmul.f32 %v346, %v348
  %v351 = vlaneseq
  %v352 = vshrl.u32 %v351, 7
  %v353 = vsub.s32 0, %v352
  %v354 = vrot.slane %v349, %v353
  %v356 = vmul.f32 %v276, %v354
  %v357 = vmul.f32 %v277, %v354
  %v358 = vmul.f32 %v278, %v354
  %v359 = vmul.f32 %v279, %v354
  %v360 = vmul.f32 %v280, %v354
  %v361 = vmul.f32 %v281, %v354
  %v362 = vmul.f32 %v282, %v354
  %v363 = vmul.f32 %v283, %v354
  %v364 = vmul.f32 %v284, %v354
  %v365 = vmul.f32 %v285, %v354
  %v366 = vmul.f32 %v286, %v354
  %v367 = vmul.f32 %v287, %v354
  %v368 = vmul.f32 %v288, %v354
  %v369 = vmul.f32 %v289, %v354
  %v370 = vmul.f32 %v290, %v354
  %v371 = vmul.f32 %v291, %v354
  %v372 = vld [vmem:[%s3] sm:$0x1]
  %v374 = vlaneseq
  %v375 = vshrl.u32 %v374, 7
  %v376 = vsub.s32 0, %v375
  %v377 = vrot.slane %v372, %v376
  %v379 = vadd.f32 %v356, %v377
  %v380 = vadd.f32 %v357, %v377
  %v381 = vadd.f32 %v358, %v377
  %v382 = vadd.f32 %v359, %v377
  %v383 = vadd.f32 %v360, %v377
  %v384 = vadd.f32 %v361, %v377
  %v385 = vadd.f32 %v362, %v377
  %v386 = vadd.f32 %v363, %v377
  %v387 = vadd.f32 %v364, %v377
  %v388 = vadd.f32 %v365, %v377
  %v389 = vadd.f32 %v366, %v377
  %v390 = vadd.f32 %v367, %v377
  %v391 = vadd.f32 %v368, %v377
  %v392 = vadd.f32 %v369, %v377
  %v393 = vadd.f32 %v370, %v377
  %v394 = vadd.f32 %v371, %v377
  %v395 = vmax.f32 %v379, 0.0
  %v396 = vmax.f32 %v380, 0.0
  %v397 = vmax.f32 %v381, 0.0
  %v398 = vmax.f32 %v382, 0.0
  %v399 = vmax.f32 %v383, 0.0
  %v400 = vmax.f32 %v384, 0.0
  %v401 = vmax.f32 %v385, 0.0
  %v402 = vmax.f32 %v386, 0.0
  %v403 = vmax.f32 %v387, 0.0
  %v404 = vmax.f32 %v388, 0.0
  %v405 = vmax.f32 %v389, 0.0
  %v406 = vmax.f32 %v390, 0.0
  %v407 = vmax.f32 %v391, 0.0
  %v408 = vmax.f32 %v392, 0.0
  %v409 = vmax.f32 %v393, 0.0
  %v410 = vmax.f32 %v394, 0.0
  %v411 = vpack.c.bf16 %v396, %v395
  %v412 = vpack.c.bf16 %v398, %v397
  %v413 = vpack.c.bf16 %v400, %v399
  %v414 = vpack.c.bf16 %v402, %v401
  %v415 = vpack.c.bf16 %v404, %v403
  %v416 = vpack.c.bf16 %v406, %v405
  %v417 = vpack.c.bf16 %v408, %v407
  %v418 = vpack.c.bf16 %v410, %v409
  %v427 = vunpack.c.l.b16 %v411
  %v428 = vunpack.c.h.b16 %v411
  %v429 = vunpack.c.l.b16 %v412
  %v430 = vunpack.c.h.b16 %v412
  %v431 = vunpack.c.l.b16 %v413
  %v432 = vunpack.c.h.b16 %v413
  %v433 = vunpack.c.l.b16 %v414
  %v434 = vunpack.c.h.b16 %v414
  %v435 = vunpack.c.l.b16 %v415
  %v436 = vunpack.c.h.b16 %v415
  %v437 = vunpack.c.l.b16 %v416
  %v438 = vunpack.c.h.b16 %v416
  %v439 = vunpack.c.l.b16 %v417
  %v440 = vunpack.c.h.b16 %v417
  %v441 = vunpack.c.l.b16 %v418
  %v442 = vunpack.c.h.b16 %v418
  %v443 = vpack.c.b16 %v427, %v427
  %v444 = vpack.c.b16 %v428, %v428
  %v445 = vpack.c.b16 %v429, %v429
  %v446 = vpack.c.b16 %v430, %v430
  %v447 = vpack.c.b16 %v431, %v431
  %v448 = vpack.c.b16 %v432, %v432
  %v449 = vpack.c.b16 %v433, %v433
  %v450 = vpack.c.b16 %v434, %v434
  %v451 = vpack.c.b16 %v435, %v435
  %v452 = vpack.c.b16 %v436, %v436
  %v453 = vpack.c.b16 %v437, %v437
  %v454 = vpack.c.b16 %v438, %v438
  %v455 = vpack.c.b16 %v439, %v439
  %v456 = vpack.c.b16 %v440, %v440
  %v457 = vpack.c.b16 %v441, %v441
  %v458 = vpack.c.b16 %v442, %v442
  %vm475 = vcmask 60416
  %476 = vst.msk [vmem:[%s4] sm:$0xf] %vm475, %v443
  %477 = vst.msk [vmem:[%s4 + $0x4] sm:$0xf] %vm475, %v444
  %478 = vst.msk [vmem:[%s4 + $0x8] sm:$0xf] %vm475, %v445
  %479 = vst.msk [vmem:[%s4 + $0xc] sm:$0xf] %vm475, %v446
  %480 = vst.msk [vmem:[%s4 + $0x10] sm:$0xf] %vm475, %v447
  %481 = vst.msk [vmem:[%s4 + $0x14] sm:$0xf] %vm475, %v448
  %482 = vst.msk [vmem:[%s4 + $0x18] sm:$0xf] %vm475, %v449
  %483 = vst.msk [vmem:[%s4 + $0x1c] sm:$0xf] %vm475, %v450
  %484 = vst.msk [vmem:[%s4 + $0x20] sm:$0xf] %vm475, %v451
  %485 = vst.msk [vmem:[%s4 + $0x24] sm:$0xf] %vm475, %v452
  %486 = vst.msk [vmem:[%s4 + $0x28] sm:$0xf] %vm475, %v453
  %487 = vst.msk [vmem:[%s4 + $0x2c] sm:$0xf] %vm475, %v454
  %488 = vst.msk [vmem:[%s4 + $0x30] sm:$0xf] %vm475, %v455
  %489 = vst.msk [vmem:[%s4 + $0x34] sm:$0xf] %vm475, %v456
  %490 = vst.msk [vmem:[%s4 + $0x38] sm:$0xf] %vm475, %v457
  %491 = vst.msk [vmem:[%s4 + $0x3c] sm:$0xf] %vm475, %v458
  // Predicated region
  $region18: #{_lambda_.6} parent=0 // pred_check
    _
  $region19: #{_lambda_.6} parent=0 // pred_check_branch
    %493 = sbr.rel (0) target = $region21
  $region20: #{_lambda_.6} parent=0 // pred_region
    _
  $region21: #{_lambda_.6} parent=0 // pred_fallthru
    _
  // Predicated region
  $region22: #{_lambda_.6} parent=0 // pred_check
    _
  $region23: #{_lambda_.6} parent=0 // pred_check_branch
    %495 = sbr.rel (0) target = $region25
  $region24: #{_lambda_.6} parent=0 // pred_region
    _
  $region25: #{_lambda_.6} parent=0 // pred_fallthru
    _

// kernel: _lambda_.7
$region0: #{_lambda_.7}
  #allocation0 [shape = 'u32[]', space=smem, size = 0x4, offset = 0x4, fixed_abs, tag = 'smem constant byte address 0x4 - core index']
  #allocation1 [shape = 'u32[144,128]{1,0:T(1,128)}', space=vmem, size = 0x12000, scoped, tag = 'internal scratch']
  %s0 = inlined_call_operand.vmem [shape: bf16[128,80], index: 0, kind: input, shape index: {}]
  %s1 = inlined_call_operand.vmem [shape: bf16[80,128], index: 1, kind: input, shape index: {}]
  %s2 = inlined_call_operand.vmem [shape: f32[1,8], index: 2, kind: input, shape index: {}]
  %s3 = inlined_call_operand.vmem [shape: f32[128,8], index: 3, kind: output, shape index: {}]
  %s4 = sld [smem:[#allocation0]]
  $region22: #{_lambda_.7} parent=0
    _
  %s6 = ssub.s32 1, %s4
  %s7 = scalar_select 0, %s6, %s4
  // Predicated region
  $region2: #{_lambda_.7} parent=0 // pred_check
    _
  $region3: #{_lambda_.7} parent=0 // pred_check_branch
    %9 = sbr.rel (0) target = $region5
  $region4: #{_lambda_.7} parent=0 // pred_region
    _
  $region5: #{_lambda_.7} parent=0 // pred_fallthru
    _
  // Predicated region
  $region6: #{_lambda_.7} parent=0 // pred_check
    _
  $region7: #{_lambda_.7} parent=0 // pred_check_branch
    %11 = sbr.rel (0) target = $region9
  $region8: #{_lambda_.7} parent=0 // pred_region
    _
  $region9: #{_lambda_.7} parent=0 // pred_fallthru
    _
  // Predicated region
  $region10: #{_lambda_.7} parent=0 // pred_check
    _
  $region11: #{_lambda_.7} parent=0 // pred_check_branch
    %13 = sbr.rel (0) target = $region13
  $region12: #{_lambda_.7} parent=0 // pred_region
    _
  $region13: #{_lambda_.7} parent=0 // pred_fallthru
    _
  %v15 = vld [vmem:[%s0] sm:$0xf]
  %v16 = vld [vmem:[%s0 + $0x4] sm:$0xf]
  %v17 = vld [vmem:[%s0 + $0x8] sm:$0xf]
  %v18 = vld [vmem:[%s0 + $0xc] sm:$0xf]
  %v19 = vld [vmem:[%s0 + $0x10] sm:$0xf]
  %v20 = vld [vmem:[%s0 + $0x14] sm:$0xf]
  %v21 = vld [vmem:[%s0 + $0x18] sm:$0xf]
  %v22 = vld [vmem:[%s0 + $0x1c] sm:$0xf]
  %v23 = vld [vmem:[%s0 + $0x20] sm:$0xf]
  %v24 = vld [vmem:[%s0 + $0x24] sm:$0xf]
  %v25 = vld [vmem:[%s0 + $0x28] sm:$0xf]
  %v26 = vld [vmem:[%s0 + $0x2c] sm:$0xf]
  %v27 = vld [vmem:[%s0 + $0x30] sm:$0xf]
  %v28 = vld [vmem:[%s0 + $0x34] sm:$0xf]
  %v29 = vld [vmem:[%s0 + $0x38] sm:$0xf]
  %v30 = vld [vmem:[%s0 + $0x3c] sm:$0xf]
  %v31 = vld [vmem:[%s1] sm:$0xf]
  %v32 = vld [vmem:[%s1 + $0x4] sm:$0xf]
  %v33 = vld [vmem:[%s1 + $0x8] sm:$0xf]
  %v34 = vld [vmem:[%s1 + $0xc] sm:$0xf]
  %v35 = vld [vmem:[%s1 + $0x10] sm:$0xf]
  %v36 = vld [vmem:[%s1 + $0x14] sm:$0xf]
  %v37 = vld [vmem:[%s1 + $0x18] sm:$0xf]
  %v38 = vld [vmem:[%s1 + $0x1c] sm:$0xf]
  %v39 = vld [vmem:[%s1 + $0x20] sm:$0xf]
  %v40 = vld [vmem:[%s1 + $0x24] sm:$0xf]
  %v57 = vunpack.c.l.b16 %v15
  %v58 = vunpack.c.l.b16 %v16
  %v59 = vunpack.c.l.b16 %v17
  %v60 = vunpack.c.l.b16 %v18
  %v61 = vunpack.c.l.b16 %v19
  %v62 = vunpack.c.l.b16 %v20
  %v63 = vunpack.c.l.b16 %v21
  %v64 = vunpack.c.l.b16 %v22
  %v65 = vunpack.c.l.b16 %v23
  %v66 = vunpack.c.l.b16 %v24
  %v67 = vunpack.c.l.b16 %v25
  %v68 = vunpack.c.l.b16 %v26
  %v69 = vunpack.c.l.b16 %v27
  %v70 = vunpack.c.l.b16 %v28
  %v71 = vunpack.c.l.b16 %v29
  %v72 = vunpack.c.l.b16 %v30
  %v73 = vpack.c.b16 %v58, %v57
  %v74 = vpack.c.b16 %v60, %v59
  %v75 = vpack.c.b16 %v62, %v61
  %v76 = vpack.c.b16 %v64, %v63
  %v77 = vpack.c.b16 %v66, %v65
  %v78 = vpack.c.b16 %v68, %v67
  %v79 = vpack.c.b16 %v70, %v69
  %v80 = vpack.c.b16 %v72, %v71
  %v91 = vunpack.c.l.b16 %v31
  %v92 = vunpack.c.l.b16 %v32
  %v93 = vunpack.c.l.b16 %v33
  %v94 = vunpack.c.l.b16 %v34
  %v95 = vunpack.c.l.b16 %v35
  %v96 = vunpack.c.l.b16 %v36
  %v97 = vunpack.c.l.b16 %v37
  %v98 = vunpack.c.l.b16 %v38
  %v99 = vunpack.c.l.b16 %v39
  %v100 = vunpack.c.l.b16 %v40
  %v101 = vpack.c.b16 %v92, %v91
  %v102 = vpack.c.b16 %v94, %v93
  %v103 = vpack.c.b16 %v96, %v95
  %v104 = vpack.c.b16 %v98, %v97
  %v105 = vpack.c.b16 %v100, %v99
  %vm111 = vcmask 654336
  %v113 = vsel %vm111, %v73, 0
  %v116 = vsel %vm111, %v74, 0
  %v119 = vsel %vm111, %v75, 0
  %v122 = vsel %vm111, %v76, 0
  %v125 = vsel %vm111, %v77, 0
  %v128 = vsel %vm111, %v78, 0
  %v131 = vsel %vm111, %v79, 0
  %v134 = vsel %vm111, %v80, 0
  %136 = vmatprep.subr.bf16.mxu0 0
  %137 = vmatpush1.bf16.msra.mxu0 0
  %138 = vmatprep.subr.bf16.mxu0 0
  %139 = vmatpush1.bf16.msra.mxu0 0
  %140 = vmatprep.subr.bf16.mxu0 0
  %141 = vmatpush1.bf16.msra.mxu0 0
  %142 = vmatprep.subr.bf16.mxu0 0
  %143 = vmatpush1.bf16.msra.mxu0 %v105
  %144 = vmatprep.subr.bf16.mxu0 0
  %145 = vmatpush1.bf16.msra.mxu0 %v104
  %146 = vmatprep.subr.bf16.mxu0 0
  %147 = vmatpush1.bf16.msra.mxu0 %v103
  %148 = vmatprep.subr.bf16.mxu0 0
  %149 = vmatpush1.bf16.msra.mxu0 %v102
  %150 = vmatprep.subr.bf16.mxu0 0
  %151 = vmatpush1.bf16.msra.mxu0 %v101
  %152 = vmatprep.subr.bf16.mxu0 0
  %153 = vmatpush2.bf16.msra.mxu0 0
  %154 = vmatprep.subr.bf16.mxu0 0
  %155 = vmatpush2.bf16.msra.mxu0 0
  %156 = vmatprep.subr.bf16.mxu0 0
  %157 = vmatpush2.bf16.msra.mxu0 0
  %158 = vmatprep.subr.bf16.mxu0 0
  %159 = vmatpush2.bf16.msra.mxu0 0
  %160 = vmatprep.subr.bf16.mxu0 0
  %161 = vmatpush2.bf16.msra.mxu0 0
  %162 = vmatprep.subr.bf16.mxu0 0
  %163 = vmatpush2.bf16.msra.mxu0 0
  %164 = vmatprep.subr.bf16.mxu0 0
  %165 = vmatpush2.bf16.msra.mxu0 0
  %166 = vmatprep.subr.bf16.mxu0 0
  %167 = vmatpush2.bf16.msra.mxu0 0
  %168 = vmatprep.mubr.bf16.mxu0 0
  %169 = vmatmul.mubr.bf16.gmra.mxu0 %v113
  %v170 = vpop.f32.mrf.mxu0
  %v171 = vadd.f32 0.0, %v170
  %v172 = vpop.f32.mrf.mxu0
  %v173 = vpop.f32.mrf.mxu0
  %v174 = vadd.f32 0.0, %v173
  %v175 = vpop.f32.mrf.mxu0
  %176 = vmatprep.mubr.bf16.mxu0 0
  %177 = vmatmul.mubr.bf16.gmra.mxu0 %v116
  %v178 = vpop.f32.mrf.mxu0
  %v179 = vadd.f32 0.0, %v178
  %v180 = vpop.f32.mrf.mxu0
  %v181 = vpop.f32.mrf.mxu0
  %v182 = vadd.f32 0.0, %v181
  %v183 = vpop.f32.mrf.mxu0
  %184 = vmatprep.mubr.bf16.mxu0 0
  %185 = vmatmul.mubr.bf16.gmra.mxu0 %v119
  %v186 = vpop.f32.mrf.mxu0
  %v187 = vadd.f32 0.0, %v186
  %v188 = vpop.f32.mrf.mxu0
  %v189 = vpop.f32.mrf.mxu0
  %v190 = vadd.f32 0.0, %v189
  %v191 = vpop.f32.mrf.mxu0
  %192 = vmatprep.mubr.bf16.mxu0 0
  %193 = vmatmul.mubr.bf16.gmra.mxu0 %v122
  %v194 = vpop.f32.mrf.mxu0
  %v195 = vadd.f32 0.0, %v194
  %v196 = vpop.f32.mrf.mxu0
  %v197 = vpop.f32.mrf.mxu0
  %v198 = vadd.f32 0.0, %v197
  %v199 = vpop.f32.mrf.mxu0
  %200 = vmatprep.mubr.bf16.mxu0 0
  %201 = vmatmul.mubr.bf16.gmra.mxu0 %v125
  %v202 = vpop.f32.mrf.mxu0
  %v203 = vadd.f32 0.0, %v202
  %v204 = vpop.f32.mrf.mxu0
  %v205 = vpop.f32.mrf.mxu0
  %v206 = vadd.f32 0.0, %v205
  %v207 = vpop.f32.mrf.mxu0
  %208 = vmatprep.mubr.bf16.mxu0 0
  %209 = vmatmul.mubr.bf16.gmra.mxu0 %v128
  %v210 = vpop.f32.mrf.mxu0
  %v211 = vadd.f32 0.0, %v210
  %v212 = vpop.f32.mrf.mxu0
  %v213 = vpop.f32.mrf.mxu0
  %v214 = vadd.f32 0.0, %v213
  %v215 = vpop.f32.mrf.mxu0
  %216 = vmatprep.mubr.bf16.mxu0 0
  %217 = vmatmul.mubr.bf16.gmra.mxu0 %v131
  %v218 = vpop.f32.mrf.mxu0
  %v219 = vadd.f32 0.0, %v218
  %v220 = vpop.f32.mrf.mxu0
  %v221 = vpop.f32.mrf.mxu0
  %v222 = vadd.f32 0.0, %v221
  %v223 = vpop.f32.mrf.mxu0
  %224 = vmatprep.mubr.bf16.mxu0 0
  %225 = vmatmul.mubr.bf16.gmra.mxu0 %v134
  %v226 = vpop.f32.mrf.mxu0
  %v227 = vadd.f32 0.0, %v226
  %v228 = vpop.f32.mrf.mxu0
  %v229 = vpop.f32.mrf.mxu0
  %v230 = vadd.f32 0.0, %v229
  %v231 = vpop.f32.mrf.mxu0
  %232 = vdwg.mxu0
  %v233 = vld [vmem:[%s2] sm:$0x1]
  %v235 = vlaneseq
  %v236 = vshrl.u32 %v235, 7
  %v237 = vsub.s32 0, %v236
  %v238 = vrot.slane %v233, %v237
  %v240 = vadd.f32 %v171, %v238
  %v241 = vadd.f32 %v174, %v238
  %v242 = vadd.f32 %v179, %v238
  %v243 = vadd.f32 %v182, %v238
  %v244 = vadd.f32 %v187, %v238
  %v245 = vadd.f32 %v190, %v238
  %v246 = vadd.f32 %v195, %v238
  %v247 = vadd.f32 %v198, %v238
  %v248 = vadd.f32 %v203, %v238
  %v249 = vadd.f32 %v206, %v238
  %v250 = vadd.f32 %v211, %v238
  %v251 = vadd.f32 %v214, %v238
  %v252 = vadd.f32 %v219, %v238
  %v253 = vadd.f32 %v222, %v238
  %v254 = vadd.f32 %v227, %v238
  %v255 = vadd.f32 %v230, %v238
  %vm256 = vcmask 64512
  %257 = vst.msk [vmem:[%s3] sm:$0xff] %vm256, %v240
  %258 = vst.msk [vmem:[%s3 + $0x8] sm:$0xff] %vm256, %v241
  %259 = vst.msk [vmem:[%s3 + $0x10] sm:$0xff] %vm256, %v242
  %260 = vst.msk [vmem:[%s3 + $0x18] sm:$0xff] %vm256, %v243
  %261 = vst.msk [vmem:[%s3 + $0x20] sm:$0xff] %vm256, %v244
  %262 = vst.msk [vmem:[%s3 + $0x28] sm:$0xff] %vm256, %v245
  %263 = vst.msk [vmem:[%s3 + $0x30] sm:$0xff] %vm256, %v246
  %264 = vst.msk [vmem:[%s3 + $0x38] sm:$0xff] %vm256, %v247
  %265 = vst.msk [vmem:[%s3 + $0x40] sm:$0xff] %vm256, %v248
  %266 = vst.msk [vmem:[%s3 + $0x48] sm:$0xff] %vm256, %v249
  %267 = vst.msk [vmem:[%s3 + $0x50] sm:$0xff] %vm256, %v250
  %268 = vst.msk [vmem:[%s3 + $0x58] sm:$0xff] %vm256, %v251
  %269 = vst.msk [vmem:[%s3 + $0x60] sm:$0xff] %vm256, %v252
  %270 = vst.msk [vmem:[%s3 + $0x68] sm:$0xff] %vm256, %v253
  %271 = vst.msk [vmem:[%s3 + $0x70] sm:$0xff] %vm256, %v254
  %272 = vst.msk [vmem:[%s3 + $0x78] sm:$0xff] %vm256, %v255
  // Predicated region
  $region14: #{_lambda_.7} parent=0 // pred_check
    _
  $region15: #{_lambda_.7} parent=0 // pred_check_branch
    %274 = sbr.rel (0) target = $region17
  $region16: #{_lambda_.7} parent=0 // pred_region
    _
  $region17: #{_lambda_.7} parent=0 // pred_fallthru
    _
  // Predicated region
  $region18: #{_lambda_.7} parent=0 // pred_check
    _
  $region19: #{_lambda_.7} parent=0 // pred_check_branch
    %276 = sbr.rel (0) target = $region21
  $region20: #{_lambda_.7} parent=0 // pred_region
    _
  $region21: #{_lambda_.7} parent=0 // pred_fallthru
    _

// kernel: _lambda_.8
$region0: #{_lambda_.8}
  #allocation0 [shape = 'u32[]', space=smem, size = 0x4, offset = 0x4, fixed_abs, tag = 'smem constant byte address 0x4 - core index']
  #allocation1 [shape = 'u32[144,128]{1,0:T(1,128)}', space=vmem, size = 0x12000, scoped, tag = 'internal scratch']
  %s0 = inlined_call_operand.vmem [shape: bf16[32,80], index: 0, kind: input, shape index: {}]
  %s1 = inlined_call_operand.vmem [shape: bf16[80,128], index: 1, kind: input, shape index: {}]
  %s2 = inlined_call_operand.vmem [shape: f32[1,16], index: 2, kind: input, shape index: {}]
  %s3 = inlined_call_operand.vmem [shape: f32[1,16], index: 3, kind: input, shape index: {}]
  %s4 = inlined_call_operand.vmem [shape: bf16[32,16], index: 4, kind: output, shape index: {}]
  %s5 = sld [smem:[#allocation0]]
  $region26: #{_lambda_.8} parent=0
    _
  %s7 = ssub.s32 1, %s5
  %s8 = scalar_select 0, %s7, %s5
  // Predicated region
  $region2: #{_lambda_.8} parent=0 // pred_check
    _
  $region3: #{_lambda_.8} parent=0 // pred_check_branch
    %10 = sbr.rel (0) target = $region5
  $region4: #{_lambda_.8} parent=0 // pred_region
    _
  $region5: #{_lambda_.8} parent=0 // pred_fallthru
    _
  // Predicated region
  $region6: #{_lambda_.8} parent=0 // pred_check
    _
  $region7: #{_lambda_.8} parent=0 // pred_check_branch
    %12 = sbr.rel (0) target = $region9
  $region8: #{_lambda_.8} parent=0 // pred_region
    _
  $region9: #{_lambda_.8} parent=0 // pred_fallthru
    _
  // Predicated region
  $region10: #{_lambda_.8} parent=0 // pred_check
    _
  $region11: #{_lambda_.8} parent=0 // pred_check_branch
    %14 = sbr.rel (0) target = $region13
  $region12: #{_lambda_.8} parent=0 // pred_region
    _
  $region13: #{_lambda_.8} parent=0 // pred_fallthru
    _
  // Predicated region
  $region14: #{_lambda_.8} parent=0 // pred_check
    _
  $region15: #{_lambda_.8} parent=0 // pred_check_branch
    %16 = sbr.rel (0) target = $region17
  $region16: #{_lambda_.8} parent=0 // pred_region
    _
  $region17: #{_lambda_.8} parent=0 // pred_fallthru
    _
  %v18 = vld [vmem:[%s0] sm:$0xf]
  %v19 = vld [vmem:[%s0 + $0x4] sm:$0xf]
  %v20 = vld [vmem:[%s0 + $0x8] sm:$0xf]
  %v21 = vld [vmem:[%s0 + $0xc] sm:$0xf]
  %v22 = vld [vmem:[%s1] sm:$0xf]
  %v23 = vld [vmem:[%s1 + $0x4] sm:$0xf]
  %v24 = vld [vmem:[%s1 + $0x8] sm:$0xf]
  %v25 = vld [vmem:[%s1 + $0xc] sm:$0xf]
  %v26 = vld [vmem:[%s1 + $0x10] sm:$0xf]
  %v27 = vld [vmem:[%s1 + $0x14] sm:$0xf]
  %v28 = vld [vmem:[%s1 + $0x18] sm:$0xf]
  %v29 = vld [vmem:[%s1 + $0x1c] sm:$0xf]
  %v30 = vld [vmem:[%s1 + $0x20] sm:$0xf]
  %v31 = vld [vmem:[%s1 + $0x24] sm:$0xf]
  %v36 = vunpack.c.l.b16 %v18
  %v37 = vunpack.c.l.b16 %v19
  %v38 = vunpack.c.l.b16 %v20
  %v39 = vunpack.c.l.b16 %v21
  %v40 = vpack.c.b16 %v37, %v36
  %v41 = vpack.c.b16 %v39, %v38
  %v52 = vunpack.c.l.b16 %v22
  %v53 = vunpack.c.l.b16 %v23
  %v54 = vunpack.c.l.b16 %v24
  %v55 = vunpack.c.l.b16 %v25
  %v56 = vunpack.c.l.b16 %v26
  %v57 = vunpack.c.l.b16 %v27
  %v58 = vunpack.c.l.b16 %v28
  %v59 = vunpack.c.l.b16 %v29
  %v60 = vunpack.c.l.b16 %v30
  %v61 = vunpack.c.l.b16 %v31
  %v62 = vpack.c.b16 %v53, %v52
  %v63 = vpack.c.b16 %v55, %v54
  %v64 = vpack.c.b16 %v57, %v56
  %v65 = vpack.c.b16 %v59, %v58
  %v66 = vpack.c.b16 %v61, %v60
  %vm72 = vcmask 654336
  %v74 = vsel %vm72, %v40, 0
  %v77 = vsel %vm72, %v41, 0
  %79 = vmatprep.subr.bf16.mxu0 0
  %80 = vmatpush1.bf16.msra.mxu0 0
  %81 = vmatprep.subr.bf16.mxu0 0
  %82 = vmatpush1.bf16.msra.mxu0 0
  %83 = vmatprep.subr.bf16.mxu0 0
  %84 = vmatpush1.bf16.msra.mxu0 0
  %85 = vmatprep.subr.bf16.mxu0 0
  %86 = vmatpush1.bf16.msra.mxu0 %v66
  %87 = vmatprep.subr.bf16.mxu0 0
  %88 = vmatpush1.bf16.msra.mxu0 %v65
  %89 = vmatprep.subr.bf16.mxu0 0
  %90 = vmatpush1.bf16.msra.mxu0 %v64
  %91 = vmatprep.subr.bf16.mxu0 0
  %92 = vmatpush1.bf16.msra.mxu0 %v63
  %93 = vmatprep.subr.bf16.mxu0 0
  %94 = vmatpush1.bf16.msra.mxu0 %v62
  %95 = vmatprep.subr.bf16.mxu0 0
  %96 = vmatpush2.bf16.msra.mxu0 0
  %97 = vmatprep.subr.bf16.mxu0 0
  %98 = vmatpush2.bf16.msra.mxu0 0
  %99 = vmatprep.subr.bf16.mxu0 0
  %100 = vmatpush2.bf16.msra.mxu0 0
  %101 = vmatprep.subr.bf16.mxu0 0
  %102 = vmatpush2.bf16.msra.mxu0 0
  %103 = vmatprep.subr.bf16.mxu0 0
  %104 = vmatpush2.bf16.msra.mxu0 0
  %105 = vmatprep.subr.bf16.mxu0 0
  %106 = vmatpush2.bf16.msra.mxu0 0
  %107 = vmatprep.subr.bf16.mxu0 0
  %108 = vmatpush2.bf16.msra.mxu0 0
  %109 = vmatprep.subr.bf16.mxu0 0
  %110 = vmatpush2.bf16.msra.mxu0 0
  %111 = vmatprep.mubr.bf16.mxu0 0
  %112 = vmatmul.mubr.bf16.gmra.mxu0 %v74
  %v113 = vpop.f32.mrf.mxu0
  %v114 = vadd.f32 0.0, %v113
  %v115 = vpop.f32.mrf.mxu0
  %v116 = vpop.f32.mrf.mxu0
  %v117 = vadd.f32 0.0, %v116
  %v118 = vpop.f32.mrf.mxu0
  %119 = vmatprep.mubr.bf16.mxu0 0
  %120 = vmatmul.mubr.bf16.gmra.mxu0 %v77
  %v121 = vpop.f32.mrf.mxu0
  %v122 = vadd.f32 0.0, %v121
  %v123 = vpop.f32.mrf.mxu0
  %v124 = vpop.f32.mrf.mxu0
  %v125 = vadd.f32 0.0, %v124
  %v126 = vpop.f32.mrf.mxu0
  %127 = vdwg.mxu0
  %vm128 = vcmask 130048
  %v129 = vsel %vm128, %v114, 0.0
  %v130 = vsel %vm128, %v117, 0.0
  %v131 = vadd.f32 %v129, %v130
  %v132 = vsel %vm128, %v122, 0.0
  %v133 = vadd.f32 %v131, %v132
  %v134 = vsel %vm128, %v125, 0.0
  %v135 = vadd.f32 %v133, %v134
  %v136 = vrot.slane %v135, 4
  %v137 = vadd.f32 %v135, %v136
  %v138 = vrot.slane %v137, 2
  %v139 = vadd.f32 %v137, %v138
  %v140 = vrot.slane %v139, 1
  %v141 = vadd.f32 %v139, %v140
  %v142 = vrcp.pop 32.0
  %v143 = vmul.f32 %v141, %v142
  %v144 = vsub.f32 %v114, %v143
  %v145 = vsub.f32 %v117, %v143
  %v146 = vsub.f32 %v122, %v143
  %v147 = vsub.f32 %v125, %v143
  %v148 = vmul.f32 %v144, %v144
  %v149 = vmul.f32 %v145, %v145
  %v150 = vmul.f32 %v146, %v146
  %v151 = vmul.f32 %v147, %v147
  %v152 = vsel %vm128, %v148, 0.0
  %v153 = vsel %vm128, %v149, 0.0
  %v154 = vadd.f32 %v152, %v153
  %v155 = vsel %vm128, %v150, 0.0
  %v156 = vadd.f32 %v154, %v155
  %v157 = vsel %vm128, %v151, 0.0
  %v158 = vadd.f32 %v156, %v157
  %v159 = vrot.slane %v158, 4
  %v160 = vadd.f32 %v158, %v159
  %v161 = vrot.slane %v160, 2
  %v162 = vadd.f32 %v160, %v161
  %v163 = vrot.slane %v162, 1
  %v164 = vadd.f32 %v162, %v163
  %v165 = vmul.f32 %v164, %v142
  %v166 = vld [vmem:[%s2] sm:$0x1]
  %v167 = vadd.f32 %v165, 1e-05
  %v168 = vrsqrt.pop %v167
  %v169 = vmul.f32 %v166, %v168
  %v171 = vlaneseq
  %v172 = vshrl.u32 %v171, 7
  %v173 = vsub.s32 0, %v172
  %v174 = vrot.slane %v169, %v173
  %v176 = vmul.f32 %v144, %v174
  %v177 = vmul.f32 %v145, %v174
  %v178 = vmul.f32 %v146, %v174
  %v179 = vmul.f32 %v147, %v174
  %v180 = vld [vmem:[%s3] sm:$0x1]
  %v182 = vlaneseq
  %v183 = vshrl.u32 %v182, 7
  %v184 = vsub.s32 0, %v183
  %v185 = vrot.slane %v180, %v184
  %v187 = vadd.f32 %v176, %v185
  %v188 = vadd.f32 %v177, %v185
  %v189 = vadd.f32 %v178, %v185
  %v190 = vadd.f32 %v179, %v185
  %v191 = vmax.f32 %v187, 0.0
  %v192 = vmax.f32 %v188, 0.0
  %v193 = vmax.f32 %v189, 0.0
  %v194 = vmax.f32 %v190, 0.0
  %v195 = vpack.c.bf16 %v192, %v191
  %v196 = vpack.c.bf16 %v194, %v193
  %v199 = vunpack.c.l.b16 %v195
  %v200 = vunpack.c.h.b16 %v195
  %v201 = vunpack.c.l.b16 %v196
  %v202 = vunpack.c.h.b16 %v196
  %v203 = vpack.c.b16 %v199, %v199
  %v204 = vpack.c.b16 %v200, %v200
  %v205 = vpack.c.b16 %v201, %v201
  %v206 = vpack.c.b16 %v202, %v202
  %vm211 = vcmask 125952
  %212 = vst.msk [vmem:[%s4] sm:$0xf] %vm211, %v203
  %213 = vst.msk [vmem:[%s4 + $0x4] sm:$0xf] %vm211, %v204
  %214 = vst.msk [vmem:[%s4 + $0x8] sm:$0xf] %vm211, %v205
  %215 = vst.msk [vmem:[%s4 + $0xc] sm:$0xf] %vm211, %v206
  // Predicated region
  $region18: #{_lambda_.8} parent=0 // pred_check
    _
  $region19: #{_lambda_.8} parent=0 // pred_check_branch
    %217 = sbr.rel (0) target = $region21
  $region20: #{_lambda_.8} parent=0 // pred_region
    _
  $region21: #{_lambda_.8} parent=0 // pred_fallthru
    _
  // Predicated region
  $region22: #{_lambda_.8} parent=0 // pred_check
    _
  $region23: #{_lambda_.8} parent=0 // pred_check_branch
    %219 = sbr.rel (0) target = $region25
  $region24: #{_lambda_.8} parent=0 // pred_region
    _
  $region25: #{_lambda_.8} parent=0 // pred_fallthru
    _

// kernel: _lambda_.9
$region0: #{_lambda_.9}
  #allocation0 [shape = 'u32[]', space=smem, size = 0x4, offset = 0x4, fixed_abs, tag = 'smem constant byte address 0x4 - core index']
  #allocation1 [shape = 'u32[144,128]{1,0:T(1,128)}', space=vmem, size = 0x12000, scoped, tag = 'internal scratch']
  %s0 = inlined_call_operand.vmem [shape: bf16[32,144], index: 0, kind: input, shape index: {}]
  %s1 = inlined_call_operand.vmem [shape: bf16[144,128], index: 1, kind: input, shape index: {}]
  %s2 = inlined_call_operand.vmem [shape: f32[1,16], index: 2, kind: input, shape index: {}]
  %s3 = inlined_call_operand.hbm [shape: f32[32,16], index: 3, kind: output, shape index: {}]
  %s4 = sld [smem:[#allocation0]]
  $region22: #{_lambda_.9} parent=0
    _
  %s6 = ssub.s32 1, %s4
  %s7 = scalar_select 0, %s6, %s4
  $region1: #{_lambda_.9} parent=0
    #allocation2 [shape = 'u8[16384]{0}', space=vmem, size = 0x4000, scoped, tag = 'output window, operand 0, single buffered']
    #allocation3 [shape = 's32[1]{0}', space=sflag, size = 0x4, scoped, tag = 'scoped memory for _lambda_.9']
    %8 = vsyncpa [#allocation3], 0
    // Predicated region
    $region2: #{_lambda_.9} parent=1 // pred_check
      _
    $region3: #{_lambda_.9} parent=1 // pred_check_branch
      %10 = sbr.rel (0) target = $region5
    $region4: #{_lambda_.9} parent=1 // pred_region
      _
    $region5: #{_lambda_.9} parent=1 // pred_fallthru
      _
    // Predicated region
    $region6: #{_lambda_.9} parent=1 // pred_check
      _
    $region7: #{_lambda_.9} parent=1 // pred_check_branch
      %12 = sbr.rel (0) target = $region9
    $region8: #{_lambda_.9} parent=1 // pred_region
      _
    $region9: #{_lambda_.9} parent=1 // pred_fallthru
      _
    // Predicated region
    $region10: #{_lambda_.9} parent=1 // pred_check
      _
    $region11: #{_lambda_.9} parent=1 // pred_check_branch
      %14 = sbr.rel (0) target = $region13
    $region12: #{_lambda_.9} parent=1 // pred_region
      _
    $region13: #{_lambda_.9} parent=1 // pred_fallthru
      _
    %v16 = vld [vmem:[%s0] sm:$0xff]
    %v17 = vld [vmem:[%s0 + $0x8] sm:$0xff]
    %v18 = vld [vmem:[%s0 + $0x10] sm:$0xff]
    %v19 = vld [vmem:[%s0 + $0x18] sm:$0xff]
    %v20 = vld [vmem:[%s1] sm:$0xf]
    %v21 = vld [vmem:[%s1 + $0x4] sm:$0xf]
    %v22 = vld [vmem:[%s1 + $0x8] sm:$0xf]
    %v23 = vld [vmem:[%s1 + $0xc] sm:$0xf]
    %v24 = vld [vmem:[%s1 + $0x10] sm:$0xf]
    %v25 = vld [vmem:[%s1 + $0x14] sm:$0xf]
    %v26 = vld [vmem:[%s1 + $0x18] sm:$0xf]
    %v27 = vld [vmem:[%s1 + $0x1c] sm:$0xf]
    %v28 = vld [vmem:[%s1 + $0x20] sm:$0xf]
    %v29 = vld [vmem:[%s1 + $0x24] sm:$0xf]
    %v30 = vld [vmem:[%s1 + $0x28] sm:$0xf]
    %v31 = vld [vmem:[%s1 + $0x2c] sm:$0xf]
    %v32 = vld [vmem:[%s1 + $0x30] sm:$0xf]
    %v33 = vld [vmem:[%s1 + $0x34] sm:$0xf]
    %v34 = vld [vmem:[%s1 + $0x38] sm:$0xf]
    %v35 = vld [vmem:[%s1 + $0x3c] sm:$0xf]
    %v36 = vld [vmem:[%s1 + $0x40] sm:$0xf]
    %v37 = vld [vmem:[%s1 + $0x44] sm:$0xf]
    %v42 = vunpack.c.l.b16 %v16
    %v43 = vunpack.c.h.b16 %v16
    %v44 = vunpack.c.l.b16 %v17
    %v45 = vunpack.c.h.b16 %v17
    %v46 = vunpack.c.l.b16 %v18
    %v47 = vunpack.c.h.b16 %v18
    %v48 = vunpack.c.l.b16 %v19
    %v49 = vunpack.c.h.b16 %v19
    %v50 = vpack.c.b16 %v44, %v42
    %v51 = vpack.c.b16 %v45, %v43
    %v52 = vpack.c.b16 %v48, %v46
    %v53 = vpack.c.b16 %v49, %v47
    %v74 = vunpack.c.l.b16 %v20
    %v75 = vunpack.c.l.b16 %v21
    %v76 = vunpack.c.l.b16 %v22
    %v77 = vunpack.c.l.b16 %v23
    %v78 = vunpack.c.l.b16 %v24
    %v79 = vunpack.c.l.b16 %v25
    %v80 = vunpack.c.l.b16 %v26
    %v81 = vunpack.c.l.b16 %v27
    %v82 = vunpack.c.l.b16 %v28
    %v83 = vunpack.c.l.b16 %v29
    %v84 = vunpack.c.l.b16 %v30
    %v85 = vunpack.c.l.b16 %v31
    %v86 = vunpack.c.l.b16 %v32
    %v87 = vunpack.c.l.b16 %v33
    %v88 = vunpack.c.l.b16 %v34
    %v89 = vunpack.c.l.b16 %v35
    %v90 = vunpack.c.l.b16 %v36
    %v91 = vunpack.c.l.b16 %v37
    %v92 = vpack.c.b16 %v75, %v74
    %v93 = vpack.c.b16 %v77, %v76
    %v94 = vpack.c.b16 %v79, %v78
    %v95 = vpack.c.b16 %v81, %v80
    %v96 = vpack.c.b16 %v83, %v82
    %v97 = vpack.c.b16 %v85, %v84
    %v98 = vpack.c.b16 %v87, %v86
    %v99 = vpack.c.b16 %v89, %v88
    %v100 = vpack.c.b16 %v91, %v90
    %vm110 = vcmask 130048
    %v112 = vsel %vm110, %v51, 0
    %v115 = vsel %vm110, %v53, 0
    %117 = vmatprep.subr.bf16.mxu0 0
    %118 = vmatpush1.bf16.msra.mxu0 %v99
    %119 = vmatprep.subr.bf16.mxu0 0
    %120 = vmatpush1.bf16.msra.mxu0 %v98
    %121 = vmatprep.subr.bf16.mxu0 0
    %122 = vmatpush1.bf16.msra.mxu0 %v97
    %123 = vmatprep.subr.bf16.mxu0 0
    %124 = vmatpush1.bf16.msra.mxu0 %v96
    %125 = vmatprep.subr.bf16.mxu0 0
    %126 = vmatpush1.bf16.msra.mxu0 %v95
    %127 = vmatprep.subr.bf16.mxu0 0
    %128 = vmatpush1.bf16.msra.mxu0 %v94
    %129 = vmatprep.subr.bf16.mxu0 0
    %130 = vmatpush1.bf16.msra.mxu0 %v93
    %131 = vmatprep.subr.bf16.mxu0 0
    %132 = vmatpush1.bf16.msra.mxu0 %v92
    %133 = vmatprep.subr.bf16.mxu0 0
    %134 = vmatpush2.bf16.msra.mxu0 0
    %135 = vmatprep.subr.bf16.mxu0 0
    %136 = vmatpush2.bf16.msra.mxu0 0
    %137 = vmatprep.subr.bf16.mxu0 0
    %138 = vmatpush2.bf16.msra.mxu0 0
    %139 = vmatprep.subr.bf16.mxu0 0
    %140 = vmatpush2.bf16.msra.mxu0 0
    %141 = vmatprep.subr.bf16.mxu0 0
    %142 = vmatpush2.bf16.msra.mxu0 0
    %143 = vmatprep.subr.bf16.mxu0 0
    %144 = vmatpush2.bf16.msra.mxu0 0
    %145 = vmatprep.subr.bf16.mxu0 0
    %146 = vmatpush2.bf16.msra.mxu0 0
    %147 = vmatprep.subr.bf16.mxu0 0
    %148 = vmatpush2.bf16.msra.mxu0 %v100
    %149 = vmatprep.mubr.bf16.mxu0 %v112
    %150 = vmatmul.mubr.bf16.gmra.mxu0 %v50
    %v151 = vpop.f32.mrf.mxu0
    %v152 = vadd.f32 0.0, %v151
    %v153 = vpop.f32.mrf.mxu0
    %v154 = vpop.f32.mrf.mxu0
    %v155 = vadd.f32 0.0, %v154
    %v156 = vpop.f32.mrf.mxu0
    %157 = vmatprep.mubr.bf16.mxu0 %v115
    %158 = vmatmul.mubr.bf16.gmra.mxu0 %v52
    %v159 = vpop.f32.mrf.mxu0
    %v160 = vadd.f32 0.0, %v159
    %v161 = vpop.f32.mrf.mxu0
    %v162 = vpop.f32.mrf.mxu0
    %v163 = vadd.f32 0.0, %v162
    %v164 = vpop.f32.mrf.mxu0
    %165 = vdwg.mxu0
    %v166 = vld [vmem:[%s2] sm:$0x1]
    %v168 = vlaneseq
    %v169 = vshrl.u32 %v168, 7
    %v170 = vsub.s32 0, %v169
    %v171 = vrot.slane %v166, %v170
    %v173 = vadd.f32 %v152, %v171
    %v174 = vadd.f32 %v155, %v171
    %v175 = vadd.f32 %v160, %v171
    %v176 = vadd.f32 %v163, %v171
    %177 = vst.msk [vmem:[#allocation2] sm:$0xff] %vm110, %v173
    %178 = vst.msk [vmem:[#allocation2 + $0x8] sm:$0xff] %vm110, %v174
    %179 = vst.msk [vmem:[#allocation2 + $0x10] sm:$0xff] %vm110, %v175
    %180 = vst.msk [vmem:[#allocation2 + $0x18] sm:$0xff] %vm110, %v176
    // Predicated region
    $region14: #{_lambda_.9} parent=1 // pred_check
      _
    $region15: #{_lambda_.9} parent=1 // pred_check_branch
      %182 = sbr.rel (0) target = $region17
    $region16: #{_lambda_.9} parent=1 // pred_region
      %s184 = ssub.s32 512, 512
      %185 = vsyncadd [#allocation3], %s184
      %s186 = sshll.u32 [#allocation2], 4
      %s187 = int_to_ptr.vmem [resolvable:$true] %s186
      %192 = dma.vmem_to_hbm [thread:$0]  %s187, 512, %s3, [#allocation3], 128, 128, 8
    $region17: #{_lambda_.9} parent=1 // pred_fallthru
      _
    // Predicated region
    $region18: #{_lambda_.9} parent=1 // pred_check
      _
    $region19: #{_lambda_.9} parent=1 // pred_check_branch
      %194 = sbr.rel (0) target = $region21
    $region20: #{_lambda_.9} parent=1 // pred_region
      %195 = dma.done [#allocation3], 512
    $region21: #{_lambda_.9} parent=1 // pred_fallthru
      _
    %196 = vsyncpa [#allocation3], 1

</llo_original>
